<compile_context>
chip_gen: v7x
topology: tpu7x:2x2x1
jax: 0.10.0
libtpu: 0.0.40
codegen_flags: <defaults>
</compile_context>

<pallas_src>
import jax
import jax.numpy as jnp
import numpy as np
from jax import lax
from jax.experimental import pallas as pl
from jax.experimental.pallas import tpu as pltpu


def lstm_kernel(tok_ref, len_ref, embproj_ref, whh_ref, wfc_ref, bfc_ref,
                out_ref, xproj_ref):
    SB = tok_ref.shape[0]          # S * B_pad
    B = len_ref.shape[0]           # padded batch (multiple of 8)
    S = SB // B
    H, G = whh_ref.shape           # G == 4H

    # ---------- hoisted, off the recurrent critical path ----------
    # Fused embedding lookup + input projection for ALL timesteps:
    #   one_hot(tokens) @ (Emb @ W_ih^T + b)  ->  x_t @ W_ih^T + b, every t, one MXU push.
    tok = tok_ref[...]                                               # (S*B, 1) int32
    vocab = lax.broadcasted_iota(jnp.int32, (SB, embproj_ref.shape[0]), 1)
    one_hot = (vocab == tok).astype(jnp.float32)                     # (S*B, V_pad)
    xproj_ref[...] = jnp.dot(one_hot, embproj_ref[...],
                             preferred_element_type=jnp.float32)     # (S*B, 4H)

    w_hh = whh_ref[...]                                              # (H, 4H)
    lengths_b = jnp.broadcast_to(len_ref[...], (B, H))               # hoisted broadcast

    # Per-lane constants for the single-tanh gate pass (gate order i,f,g,o):
    #   g lanes:          tanh(z)                   -> scale=1.0, shift=0.0
    #   i/f/o lanes:      sigmoid(z)=0.5*tanh(z/2)+0.5 -> scale=0.5, shift=0.5
    lane = lax.broadcasted_iota(jnp.int32, (B, G), 1)
    g_lane = (lane >= 2 * H) & (lane < 3 * H)
    scale = jnp.where(g_lane, 1.0, 0.5).astype(jnp.float32)          # (B, 4H)
    shift = jnp.where(g_lane, 0.0, 0.5).astype(jnp.float32)          # (B, 4H)

    def step(t, carry):
        h, c = carry                                                 # (B, H) f32 each
        row0 = pl.multiple_of(t * B, 8)
        x_t = xproj_ref[pl.ds(row0, B), :]                           # (B, 4H) lane-dense
        # Only the hidden projection stays on the sequential path (one small MXU push).
        gates = x_t + jnp.dot(h, w_hh, preferred_element_type=jnp.float32)
        # Single EUP tanh pass over the whole (B, 4H) vreg.
        acts = scale * jnp.tanh(scale * gates) + shift
        i_g = acts[:, 0 * H:1 * H]
        f_g = acts[:, 1 * H:2 * H]
        g_g = acts[:, 2 * H:3 * H]
        o_g = acts[:, 3 * H:4 * H]
        c_new = f_g * c + i_g * g_g
        h_new = o_g * jnp.tanh(c_new)
        # pack_padded_sequence semantics: freeze h/c once t >= length[b]
        # (padded batch rows have length 0 and stay at zero).
        mask = t < lengths_b
        c = jnp.where(mask, c_new, c)
        h = jnp.where(mask, h_new, h)
        return h, c

    h0 = jnp.zeros((B, H), jnp.float32)
    c0 = jnp.zeros((B, H), jnp.float32)
    h_last, _ = lax.fori_loop(0, S, step, (h0, c0), unroll=True)

    # Fused final Linear (O == 1): elementwise mul + lane reduction, no extra XLA op.
    out_ref[...] = (jnp.sum(h_last * wfc_ref[...], axis=1, keepdims=True)
                    + bfc_ref[...])


def prepare_kernel_params(params):
    """One-time weight fusion (do NOT rebuild these per forward call)."""
    emb = params["embedding"].astype(jnp.float32)          # (V, E)
    w_ih = params["w_ih"].astype(jnp.float32)              # (4H, E)
    w_hh = params["w_hh"].astype(jnp.float32)              # (4H, H)
    H = w_hh.shape[1]
    assert params["w_fc"].shape[0] == 1, "kernel fc path assumes output_dim == 1"
    bias = (params["b_ih"] + params["b_hh"]).astype(jnp.float32).reshape(1, 4 * H)
    # emb_proj[v] = Emb[v] @ W_ih^T + (b_ih + b_hh)  -- folds lookup, x-proj and bias.
    emb_proj = emb @ w_ih.T + bias                          # (V, 4H)
    V = emb.shape[0]
    V_pad = -(-V // 128) * 128                              # lane-align gather contraction
    emb_proj = jnp.pad(emb_proj, ((0, V_pad - V), (0, 0)))
    return {
        "emb_proj": emb_proj,                               # (V_pad, 4H)
        "w_hh_t": w_hh.T,                                   # (H, 4H)
        "w_fc": params["w_fc"].astype(jnp.float32),         # (1, H)
        "b_fc": params["b_fc"].astype(jnp.float32).reshape(1, 1),
    }


def rnn_forward(text, text_length, kparams):
    """text: (S, B) int32 tokens; text_length: (B,) int32 lengths (packed semantics)."""
    S, B = text.shape
    H, G = kparams["w_hh_t"].shape
    V_pad = kparams["emb_proj"].shape[0]

    # Pad batch to the f32 sublane tile (8); padded rows get length 0 so their h/c
    # stay frozen at zero inside the kernel and are sliced away afterwards.
    B_pad = max(8, -(-B // 8) * 8)
    pad = B_pad - B
    tok = text.astype(jnp.int32)
    lengths = text_length.astype(jnp.int32)
    if pad:
        tok = jnp.pad(tok, ((0, 0), (0, pad)))
        lengths = jnp.pad(lengths, (0, pad))
    tok_flat = tok.reshape(S * B_pad, 1)
    lengths = lengths.reshape(B_pad, 1)

    out = pl.pallas_call(
        lstm_kernel,
        out_shape=jax.ShapeDtypeStruct((B_pad, 1), jnp.float32),
        grid_spec=pltpu.PrefetchScalarGridSpec(
            num_scalar_prefetch=0,
            grid=(1,),   # single invocation: whole recurrence in one kernel call
            in_specs=[
                pl.BlockSpec((S * B_pad, 1), lambda i: (0, 0)),   # token ids
                pl.BlockSpec((B_pad, 1), lambda i: (0, 0)),       # lengths
                pl.BlockSpec((V_pad, G), lambda i: (0, 0)),       # fused emb/x-proj table
                pl.BlockSpec((H, G), lambda i: (0, 0)),           # W_hh^T
                pl.BlockSpec((1, H), lambda i: (0, 0)),           # fc weight (O=1)
                pl.BlockSpec((1, 1), lambda i: (0, 0)),           # fc bias
            ],
            out_specs=pl.BlockSpec((B_pad, 1), lambda i: (0, 0)),
            scratch_shapes=[pltpu.VMEM((S * B_pad, G), jnp.float32)],  # precomputed x-proj
        ),
        compiler_params=pltpu.CompilerParams(
            dimension_semantics=("arbitrary",)),
    )(tok_flat, lengths, kparams["emb_proj"], kparams["w_hh_t"],
      kparams["w_fc"], kparams["b_fc"])

    return out[:B, 0]   # == fc(hidden.squeeze(0)).view(-1)


def rnn_forward_ref(text, text_length, params):
    """Pure-JAX reference (same packed-LSTM semantics) for verification."""
    emb_tbl = params["embedding"]
    w_ih, w_hh = params["w_ih"], params["w_hh"]
    b = params["b_ih"] + params["b_hh"]
    w_fc, b_fc = params["w_fc"], params["b_fc"]
    H = w_hh.shape[1]
    S, B = text.shape
    x = jnp.take(emb_tbl, text, axis=0)  # (S, B, E)
    lengths = text_length.astype(jnp.int32)

    def step(carry, inp):
        h, c = carry
        x_t, t = inp
        gates = x_t @ w_ih.T + h @ w_hh.T + b
        i = jax.nn.sigmoid(gates[:, :H])
        f = jax.nn.sigmoid(gates[:, H:2 * H])
        g = jnp.tanh(gates[:, 2 * H:3 * H])
        o = jax.nn.sigmoid(gates[:, 3 * H:4 * H])
        c_new = f * c + i * g
        h_new = o * jnp.tanh(c_new)
        mask = (t < lengths)[:, None]
        h = jnp.where(mask, h_new, h)
        c = jnp.where(mask, c_new, c)
        return (h, c), None

    h0 = jnp.zeros((B, H), jnp.float32)
    c0 = jnp.zeros((B, H), jnp.float32)
    (h, _), _ = lax.scan(step, (h0, c0), (x, jnp.arange(S, dtype=jnp.int32)))
    return (h @ w_fc.T + b_fc).reshape(-1)


def init_params(key, input_dim, embedding_dim, hidden_dim, output_dim):
    ks = jax.random.split(key, 7)
    scale = 0.1
    return {
        "embedding": scale * jax.random.normal(ks[0], (input_dim, embedding_dim), jnp.float32),
        "w_ih": scale * jax.random.normal(ks[1], (4 * hidden_dim, embedding_dim), jnp.float32),
        "w_hh": scale * jax.random.normal(ks[2], (4 * hidden_dim, hidden_dim), jnp.float32),
        "b_ih": scale * jax.random.normal(ks[3], (4 * hidden_dim,), jnp.float32),
        "b_hh": scale * jax.random.normal(ks[4], (4 * hidden_dim,), jnp.float32),
        "w_fc": scale * jax.random.normal(ks[5], (output_dim, hidden_dim), jnp.float32),
        "b_fc": scale * jax.random.normal(ks[6], (output_dim,), jnp.float32),
    }


if __name__ == "__main__":
    INPUT_DIM = 100      # vocab size
    EMBEDDING_DIM = 32
    HIDDEN_DIM = 32
    OUTPUT_DIM = 1
    SEQ_LEN = 8
    BATCH = 4

    key = jax.random.PRNGKey(0)
    kp, kt = jax.random.split(key)
    params = init_params(kp, INPUT_DIM, EMBEDDING_DIM, HIDDEN_DIM, OUTPUT_DIM)
    kparams = prepare_kernel_params(params)   # fused weights built once, not per call

    text = jax.random.randint(kt, (SEQ_LEN, BATCH), 0, INPUT_DIM, dtype=jnp.int32)
    # lengths sorted descending (enforce_sorted=True default in pack_padded_sequence)
    text_length = jnp.array([8, 6, 5, 3], dtype=jnp.int32)

    fwd = jax.jit(rnn_forward)
    out = jax.block_until_ready(fwd(text, text_length, kparams))

    ref = rnn_forward_ref(text, text_length, params)
    # sigmoid-via-tanh identity is exact mathematically; tolerance relaxed slightly
    # for the different transcendental implementation path (EUP tanh vs XLA sigmoid).
    np.testing.assert_allclose(np.asarray(out), np.asarray(ref), rtol=1e-4, atol=1e-5)

    print("KERNEL_OK")
</pallas_src>

<mosaic_0001>
module attributes {stable_mosaic.version = 11 : i64} {
  func.func @lstm_kernel(%arg0: i32, %arg1: memref<64x1xi32, #tpu.memory_space<vmem>>, %arg2: memref<8x1xi32, #tpu.memory_space<vmem>>, %arg3: memref<128x128xf32, #tpu.memory_space<vmem>>, %arg4: memref<32x128xf32, #tpu.memory_space<vmem>>, %arg5: memref<1x32xf32, #tpu.memory_space<vmem>>, %arg6: memref<1x1xf32, #tpu.memory_space<vmem>>, %arg7: memref<8x1xf32, #tpu.memory_space<vmem>>, %arg8: memref<64x128xf32, #tpu.memory_space<vmem>>) attributes {dimension_semantics = [#tpu.dimension_semantics<arbitrary>], iteration_bounds = array<i64: 1>, scalar_prefetch = 0 : i64, scratch_operands = 1 : i64, tpu.core_type = #tpu.core_type<tc>, window_params = [{pipeline_mode = #tpu.pipeline_mode<synchronous>, transform_indices = @transform_0, window_bounds = array<i64: 64, 1>}, {pipeline_mode = #tpu.pipeline_mode<synchronous>, transform_indices = @transform_1, window_bounds = array<i64: 8, 1>}, {pipeline_mode = #tpu.pipeline_mode<synchronous>, transform_indices = @transform_2, window_bounds = array<i64: 128, 128>}, {pipeline_mode = #tpu.pipeline_mode<synchronous>, transform_indices = @transform_3, window_bounds = array<i64: 32, 128>}, {pipeline_mode = #tpu.pipeline_mode<synchronous>, transform_indices = @transform_4, window_bounds = array<i64: 1, 32>}, {pipeline_mode = #tpu.pipeline_mode<synchronous>, transform_indices = @transform_5, window_bounds = array<i64: 1, 1>}, {pipeline_mode = #tpu.pipeline_mode<synchronous>, transform_indices = @transform_6, window_bounds = array<i64: 8, 1>}]} {
    %c0 = arith.constant 0 : index
    %c0_0 = arith.constant 0 : index
    %0 = vector.load %arg1[%c0, %c0_0] : memref<64x1xi32, #tpu.memory_space<vmem>>, vector<64x1xi32>
    %1 = tpu.iota {dimensions = array<i32: 1>} : vector<64x128xi32>
    %2 = vector.broadcast %0 : vector<64x1xi32> to vector<64x128xi32>
    %3 = arith.cmpi eq, %1, %2 : vector<64x128xi32>
    %4 = arith.extui %3 : vector<64x128xi1> to vector<64x128xi32>
    %5 = arith.sitofp %4 : vector<64x128xi32> to vector<64x128xf32>
    %c0_1 = arith.constant 0 : index
    %c0_2 = arith.constant 0 : index
    %6 = vector.load %arg3[%c0_1, %c0_2] : memref<128x128xf32, #tpu.memory_space<vmem>>, vector<128x128xf32>
    %cst = arith.constant dense<0.000000e+00> : vector<64x128xf32>
    %7 = tpu.matmul %5, %6, %cst {dimension_numbers = #tpu.dot_dimension_numbers<[1], [0], [0], [1], [0, 0, 1, 1], [], []>} : vector<64x128xf32>, vector<128x128xf32>, vector<64x128xf32> -> vector<64x128xf32>
    %c0_3 = arith.constant 0 : index
    %c0_4 = arith.constant 0 : index
    %8 = vector.load %arg8[%c0_3, %c0_4] : memref<64x128xf32, #tpu.memory_space<vmem>>, vector<64x128xf32>
    tpu.vector_store %arg8[%c0_3, %c0_4], %7 {strides = array<i32>} : memref<64x128xf32, #tpu.memory_space<vmem>>, vector<64x128xf32>,
    %c0_5 = arith.constant 0 : index
    %c0_6 = arith.constant 0 : index
    %9 = vector.load %arg4[%c0_5, %c0_6] : memref<32x128xf32, #tpu.memory_space<vmem>>, vector<32x128xf32>
    %c0_7 = arith.constant 0 : index
    %c0_8 = arith.constant 0 : index
    %10 = vector.load %arg2[%c0_7, %c0_8] : memref<8x1xi32, #tpu.memory_space<vmem>>, vector<8x1xi32>
    %11 = vector.shape_cast %10 : vector<8x1xi32> to vector<8x1xi32>
    %12 = vector.broadcast %11 : vector<8x1xi32> to vector<8x32xi32>
    %13 = tpu.iota {dimensions = array<i32: 1>} : vector<8x128xi32>
    %c64_i32 = arith.constant 64 : i32
    %14 = vector.broadcast %c64_i32 : i32 to vector<8x128xi32>
    %15 = arith.cmpi sge, %13, %14 : vector<8x128xi32>
    %c96_i32 = arith.constant 96 : i32
    %16 = vector.broadcast %c96_i32 : i32 to vector<8x128xi32>
    %17 = arith.cmpi slt, %13, %16 : vector<8x128xi32>
    %18 = arith.andi %15, %17 : vector<8x128xi1>
    %cst_9 = arith.constant 1.000000e+00 : f32
    %cst_10 = arith.constant 5.000000e-01 : f32
    %19 = vector.broadcast %cst_9 : f32 to vector<8x128xf32>
    %20 = vector.broadcast %cst_10 : f32 to vector<8x128xf32>
    %21 = arith.select %18, %19, %20 : vector<8x128xi1>, vector<8x128xf32>
    %cst_11 = arith.constant 0.000000e+00 : f32
    %cst_12 = arith.constant 5.000000e-01 : f32
    %22 = vector.broadcast %cst_11 : f32 to vector<8x128xf32>
    %23 = vector.broadcast %cst_12 : f32 to vector<8x128xf32>
    %24 = arith.select %18, %22, %23 : vector<8x128xi1>, vector<8x128xf32>
    %cst_13 = arith.constant 0.000000e+00 : f32
    %25 = vector.broadcast %cst_13 : f32 to vector<8x32xf32>
    %cst_14 = arith.constant 0.000000e+00 : f32
    %26 = vector.broadcast %cst_14 : f32 to vector<8x32xf32>
    %c0_i32 = arith.constant 0 : i32
    %c8_i32 = arith.constant 8 : i32
    %27 = arith.muli %c0_i32, %c8_i32 : i32
    %28 = tpu.assume_multiple %27, 8 : i32
    %29 = arith.index_cast %28 : i32 to index
    %c0_15 = arith.constant 0 : index
    %30 = vector.load %arg8[%29, %c0_15] : memref<64x128xf32, #tpu.memory_space<vmem>>, vector<8x128xf32>
    %cst_16 = arith.constant dense<0.000000e+00> : vector<8x128xf32>
    %31 = tpu.matmul %25, %9, %cst_16 {dimension_numbers = #tpu.dot_dimension_numbers<[1], [0], [0], [1], [0, 0, 1, 1], [], []>} : vector<8x32xf32>, vector<32x128xf32>, vector<8x128xf32> -> vector<8x128xf32>
    %32 = arith.addf %30, %31 : vector<8x128xf32>
    %33 = arith.mulf %21, %32 : vector<8x128xf32>
    %34 = math.tanh %33 : vector<8x128xf32>
    %35 = arith.mulf %21, %34 : vector<8x128xf32>
    %36 = arith.addf %35, %24 : vector<8x128xf32>
    %37 = vector.extract_strided_slice %36 {offsets = [0, 0], sizes = [8, 32], strides = [1, 1]} : vector<8x128xf32> to vector<8x32xf32>
    %38 = vector.extract_strided_slice %36 {offsets = [0, 32], sizes = [8, 32], strides = [1, 1]} : vector<8x128xf32> to vector<8x32xf32>
    %39 = vector.extract_strided_slice %36 {offsets = [0, 64], sizes = [8, 32], strides = [1, 1]} : vector<8x128xf32> to vector<8x32xf32>
    %40 = vector.extract_strided_slice %36 {offsets = [0, 96], sizes = [8, 32], strides = [1, 1]} : vector<8x128xf32> to vector<8x32xf32>
    %41 = arith.mulf %38, %26 : vector<8x32xf32>
    %42 = arith.mulf %37, %39 : vector<8x32xf32>
    %43 = arith.addf %41, %42 : vector<8x32xf32>
    %44 = math.tanh %43 : vector<8x32xf32>
    %45 = arith.mulf %40, %44 : vector<8x32xf32>
    %46 = vector.broadcast %c0_i32 : i32 to vector<8x32xi32>
    %47 = arith.cmpi slt, %46, %12 : vector<8x32xi32>
    %48 = arith.select %47, %43, %26 : vector<8x32xi1>, vector<8x32xf32>
    %49 = arith.select %47, %45, %25 : vector<8x32xi1>, vector<8x32xf32>
    %c1_i32 = arith.constant 1 : i32
    %c8_i32_17 = arith.constant 8 : i32
    %50 = arith.muli %c1_i32, %c8_i32_17 : i32
    %51 = tpu.assume_multiple %50, 8 : i32
    %52 = arith.index_cast %51 : i32 to index
    %c0_18 = arith.constant 0 : index
    %53 = vector.load %arg8[%52, %c0_18] : memref<64x128xf32, #tpu.memory_space<vmem>>, vector<8x128xf32>
    %cst_19 = arith.constant dense<0.000000e+00> : vector<8x128xf32>
    %54 = tpu.matmul %49, %9, %cst_19 {dimension_numbers = #tpu.dot_dimension_numbers<[1], [0], [0], [1], [0, 0, 1, 1], [], []>} : vector<8x32xf32>, vector<32x128xf32>, vector<8x128xf32> -> vector<8x128xf32>
    %55 = arith.addf %53, %54 : vector<8x128xf32>
    %56 = arith.mulf %21, %55 : vector<8x128xf32>
    %57 = math.tanh %56 : vector<8x128xf32>
    %58 = arith.mulf %21, %57 : vector<8x128xf32>
    %59 = arith.addf %58, %24 : vector<8x128xf32>
    %60 = vector.extract_strided_slice %59 {offsets = [0, 0], sizes = [8, 32], strides = [1, 1]} : vector<8x128xf32> to vector<8x32xf32>
    %61 = vector.extract_strided_slice %59 {offsets = [0, 32], sizes = [8, 32], strides = [1, 1]} : vector<8x128xf32> to vector<8x32xf32>
    %62 = vector.extract_strided_slice %59 {offsets = [0, 64], sizes = [8, 32], strides = [1, 1]} : vector<8x128xf32> to vector<8x32xf32>
    %63 = vector.extract_strided_slice %59 {offsets = [0, 96], sizes = [8, 32], strides = [1, 1]} : vector<8x128xf32> to vector<8x32xf32>
    %64 = arith.mulf %61, %48 : vector<8x32xf32>
    %65 = arith.mulf %60, %62 : vector<8x32xf32>
    %66 = arith.addf %64, %65 : vector<8x32xf32>
    %67 = math.tanh %66 : vector<8x32xf32>
    %68 = arith.mulf %63, %67 : vector<8x32xf32>
    %69 = vector.broadcast %c1_i32 : i32 to vector<8x32xi32>
    %70 = arith.cmpi slt, %69, %12 : vector<8x32xi32>
    %71 = arith.select %70, %66, %48 : vector<8x32xi1>, vector<8x32xf32>
    %72 = arith.select %70, %68, %49 : vector<8x32xi1>, vector<8x32xf32>
    %c2_i32 = arith.constant 2 : i32
    %c8_i32_20 = arith.constant 8 : i32
    %73 = arith.muli %c2_i32, %c8_i32_20 : i32
    %74 = tpu.assume_multiple %73, 8 : i32
    %75 = arith.index_cast %74 : i32 to index
    %c0_21 = arith.constant 0 : index
    %76 = vector.load %arg8[%75, %c0_21] : memref<64x128xf32, #tpu.memory_space<vmem>>, vector<8x128xf32>
    %cst_22 = arith.constant dense<0.000000e+00> : vector<8x128xf32>
    %77 = tpu.matmul %72, %9, %cst_22 {dimension_numbers = #tpu.dot_dimension_numbers<[1], [0], [0], [1], [0, 0, 1, 1], [], []>} : vector<8x32xf32>, vector<32x128xf32>, vector<8x128xf32> -> vector<8x128xf32>
    %78 = arith.addf %76, %77 : vector<8x128xf32>
    %79 = arith.mulf %21, %78 : vector<8x128xf32>
    %80 = math.tanh %79 : vector<8x128xf32>
    %81 = arith.mulf %21, %80 : vector<8x128xf32>
    %82 = arith.addf %81, %24 : vector<8x128xf32>
    %83 = vector.extract_strided_slice %82 {offsets = [0, 0], sizes = [8, 32], strides = [1, 1]} : vector<8x128xf32> to vector<8x32xf32>
    %84 = vector.extract_strided_slice %82 {offsets = [0, 32], sizes = [8, 32], strides = [1, 1]} : vector<8x128xf32> to vector<8x32xf32>
    %85 = vector.extract_strided_slice %82 {offsets = [0, 64], sizes = [8, 32], strides = [1, 1]} : vector<8x128xf32> to vector<8x32xf32>
    %86 = vector.extract_strided_slice %82 {offsets = [0, 96], sizes = [8, 32], strides = [1, 1]} : vector<8x128xf32> to vector<8x32xf32>
    %87 = arith.mulf %84, %71 : vector<8x32xf32>
    %88 = arith.mulf %83, %85 : vector<8x32xf32>
    %89 = arith.addf %87, %88 : vector<8x32xf32>
    %90 = math.tanh %89 : vector<8x32xf32>
    %91 = arith.mulf %86, %90 : vector<8x32xf32>
    %92 = vector.broadcast %c2_i32 : i32 to vector<8x32xi32>
    %93 = arith.cmpi slt, %92, %12 : vector<8x32xi32>
    %94 = arith.select %93, %89, %71 : vector<8x32xi1>, vector<8x32xf32>
    %95 = arith.select %93, %91, %72 : vector<8x32xi1>, vector<8x32xf32>
    %c3_i32 = arith.constant 3 : i32
    %c8_i32_23 = arith.constant 8 : i32
    %96 = arith.muli %c3_i32, %c8_i32_23 : i32
    %97 = tpu.assume_multiple %96, 8 : i32
    %98 = arith.index_cast %97 : i32 to index
    %c0_24 = arith.constant 0 : index
    %99 = vector.load %arg8[%98, %c0_24] : memref<64x128xf32, #tpu.memory_space<vmem>>, vector<8x128xf32>
    %cst_25 = arith.constant dense<0.000000e+00> : vector<8x128xf32>
    %100 = tpu.matmul %95, %9, %cst_25 {dimension_numbers = #tpu.dot_dimension_numbers<[1], [0], [0], [1], [0, 0, 1, 1], [], []>} : vector<8x32xf32>, vector<32x128xf32>, vector<8x128xf32> -> vector<8x128xf32>
    %101 = arith.addf %99, %100 : vector<8x128xf32>
    %102 = arith.mulf %21, %101 : vector<8x128xf32>
    %103 = math.tanh %102 : vector<8x128xf32>
    %104 = arith.mulf %21, %103 : vector<8x128xf32>
    %105 = arith.addf %104, %24 : vector<8x128xf32>
    %106 = vector.extract_strided_slice %105 {offsets = [0, 0], sizes = [8, 32], strides = [1, 1]} : vector<8x128xf32> to vector<8x32xf32>
    %107 = vector.extract_strided_slice %105 {offsets = [0, 32], sizes = [8, 32], strides = [1, 1]} : vector<8x128xf32> to vector<8x32xf32>
    %108 = vector.extract_strided_slice %105 {offsets = [0, 64], sizes = [8, 32], strides = [1, 1]} : vector<8x128xf32> to vector<8x32xf32>
    %109 = vector.extract_strided_slice %105 {offsets = [0, 96], sizes = [8, 32], strides = [1, 1]} : vector<8x128xf32> to vector<8x32xf32>
    %110 = arith.mulf %107, %94 : vector<8x32xf32>
    %111 = arith.mulf %106, %108 : vector<8x32xf32>
    %112 = arith.addf %110, %111 : vector<8x32xf32>
    %113 = math.tanh %112 : vector<8x32xf32>
    %114 = arith.mulf %109, %113 : vector<8x32xf32>
    %115 = vector.broadcast %c3_i32 : i32 to vector<8x32xi32>
    %116 = arith.cmpi slt, %115, %12 : vector<8x32xi32>
    %117 = arith.select %116, %112, %94 : vector<8x32xi1>, vector<8x32xf32>
    %118 = arith.select %116, %114, %95 : vector<8x32xi1>, vector<8x32xf32>
    %c4_i32 = arith.constant 4 : i32
    %c8_i32_26 = arith.constant 8 : i32
    %119 = arith.muli %c4_i32, %c8_i32_26 : i32
    %120 = tpu.assume_multiple %119, 8 : i32
    %121 = arith.index_cast %120 : i32 to index
    %c0_27 = arith.constant 0 : index
    %122 = vector.load %arg8[%121, %c0_27] : memref<64x128xf32, #tpu.memory_space<vmem>>, vector<8x128xf32>
    %cst_28 = arith.constant dense<0.000000e+00> : vector<8x128xf32>
    %123 = tpu.matmul %118, %9, %cst_28 {dimension_numbers = #tpu.dot_dimension_numbers<[1], [0], [0], [1], [0, 0, 1, 1], [], []>} : vector<8x32xf32>, vector<32x128xf32>, vector<8x128xf32> -> vector<8x128xf32>
    %124 = arith.addf %122, %123 : vector<8x128xf32>
    %125 = arith.mulf %21, %124 : vector<8x128xf32>
    %126 = math.tanh %125 : vector<8x128xf32>
    %127 = arith.mulf %21, %126 : vector<8x128xf32>
    %128 = arith.addf %127, %24 : vector<8x128xf32>
    %129 = vector.extract_strided_slice %128 {offsets = [0, 0], sizes = [8, 32], strides = [1, 1]} : vector<8x128xf32> to vector<8x32xf32>
    %130 = vector.extract_strided_slice %128 {offsets = [0, 32], sizes = [8, 32], strides = [1, 1]} : vector<8x128xf32> to vector<8x32xf32>
    %131 = vector.extract_strided_slice %128 {offsets = [0, 64], sizes = [8, 32], strides = [1, 1]} : vector<8x128xf32> to vector<8x32xf32>
    %132 = vector.extract_strided_slice %128 {offsets = [0, 96], sizes = [8, 32], strides = [1, 1]} : vector<8x128xf32> to vector<8x32xf32>
    %133 = arith.mulf %130, %117 : vector<8x32xf32>
    %134 = arith.mulf %129, %131 : vector<8x32xf32>
    %135 = arith.addf %133, %134 : vector<8x32xf32>
    %136 = math.tanh %135 : vector<8x32xf32>
    %137 = arith.mulf %132, %136 : vector<8x32xf32>
    %138 = vector.broadcast %c4_i32 : i32 to vector<8x32xi32>
    %139 = arith.cmpi slt, %138, %12 : vector<8x32xi32>
    %140 = arith.select %139, %135, %117 : vector<8x32xi1>, vector<8x32xf32>
    %141 = arith.select %139, %137, %118 : vector<8x32xi1>, vector<8x32xf32>
    %c5_i32 = arith.constant 5 : i32
    %c8_i32_29 = arith.constant 8 : i32
    %142 = arith.muli %c5_i32, %c8_i32_29 : i32
    %143 = tpu.assume_multiple %142, 8 : i32
    %144 = arith.index_cast %143 : i32 to index
    %c0_30 = arith.constant 0 : index
    %145 = vector.load %arg8[%144, %c0_30] : memref<64x128xf32, #tpu.memory_space<vmem>>, vector<8x128xf32>
    %cst_31 = arith.constant dense<0.000000e+00> : vector<8x128xf32>
    %146 = tpu.matmul %141, %9, %cst_31 {dimension_numbers = #tpu.dot_dimension_numbers<[1], [0], [0], [1], [0, 0, 1, 1], [], []>} : vector<8x32xf32>, vector<32x128xf32>, vector<8x128xf32> -> vector<8x128xf32>
    %147 = arith.addf %145, %146 : vector<8x128xf32>
    %148 = arith.mulf %21, %147 : vector<8x128xf32>
    %149 = math.tanh %148 : vector<8x128xf32>
    %150 = arith.mulf %21, %149 : vector<8x128xf32>
    %151 = arith.addf %150, %24 : vector<8x128xf32>
    %152 = vector.extract_strided_slice %151 {offsets = [0, 0], sizes = [8, 32], strides = [1, 1]} : vector<8x128xf32> to vector<8x32xf32>
    %153 = vector.extract_strided_slice %151 {offsets = [0, 32], sizes = [8, 32], strides = [1, 1]} : vector<8x128xf32> to vector<8x32xf32>
    %154 = vector.extract_strided_slice %151 {offsets = [0, 64], sizes = [8, 32], strides = [1, 1]} : vector<8x128xf32> to vector<8x32xf32>
    %155 = vector.extract_strided_slice %151 {offsets = [0, 96], sizes = [8, 32], strides = [1, 1]} : vector<8x128xf32> to vector<8x32xf32>
    %156 = arith.mulf %153, %140 : vector<8x32xf32>
    %157 = arith.mulf %152, %154 : vector<8x32xf32>
    %158 = arith.addf %156, %157 : vector<8x32xf32>
    %159 = math.tanh %158 : vector<8x32xf32>
    %160 = arith.mulf %155, %159 : vector<8x32xf32>
    %161 = vector.broadcast %c5_i32 : i32 to vector<8x32xi32>
    %162 = arith.cmpi slt, %161, %12 : vector<8x32xi32>
    %163 = arith.select %162, %158, %140 : vector<8x32xi1>, vector<8x32xf32>
    %164 = arith.select %162, %160, %141 : vector<8x32xi1>, vector<8x32xf32>
    %c6_i32 = arith.constant 6 : i32
    %c8_i32_32 = arith.constant 8 : i32
    %165 = arith.muli %c6_i32, %c8_i32_32 : i32
    %166 = tpu.assume_multiple %165, 8 : i32
    %167 = arith.index_cast %166 : i32 to index
    %c0_33 = arith.constant 0 : index
    %168 = vector.load %arg8[%167, %c0_33] : memref<64x128xf32, #tpu.memory_space<vmem>>, vector<8x128xf32>
    %cst_34 = arith.constant dense<0.000000e+00> : vector<8x128xf32>
    %169 = tpu.matmul %164, %9, %cst_34 {dimension_numbers = #tpu.dot_dimension_numbers<[1], [0], [0], [1], [0, 0, 1, 1], [], []>} : vector<8x32xf32>, vector<32x128xf32>, vector<8x128xf32> -> vector<8x128xf32>
    %170 = arith.addf %168, %169 : vector<8x128xf32>
    %171 = arith.mulf %21, %170 : vector<8x128xf32>
    %172 = math.tanh %171 : vector<8x128xf32>
    %173 = arith.mulf %21, %172 : vector<8x128xf32>
    %174 = arith.addf %173, %24 : vector<8x128xf32>
    %175 = vector.extract_strided_slice %174 {offsets = [0, 0], sizes = [8, 32], strides = [1, 1]} : vector<8x128xf32> to vector<8x32xf32>
    %176 = vector.extract_strided_slice %174 {offsets = [0, 32], sizes = [8, 32], strides = [1, 1]} : vector<8x128xf32> to vector<8x32xf32>
    %177 = vector.extract_strided_slice %174 {offsets = [0, 64], sizes = [8, 32], strides = [1, 1]} : vector<8x128xf32> to vector<8x32xf32>
    %178 = vector.extract_strided_slice %174 {offsets = [0, 96], sizes = [8, 32], strides = [1, 1]} : vector<8x128xf32> to vector<8x32xf32>
    %179 = arith.mulf %176, %163 : vector<8x32xf32>
    %180 = arith.mulf %175, %177 : vector<8x32xf32>
    %181 = arith.addf %179, %180 : vector<8x32xf32>
    %182 = math.tanh %181 : vector<8x32xf32>
    %183 = arith.mulf %178, %182 : vector<8x32xf32>
    %184 = vector.broadcast %c6_i32 : i32 to vector<8x32xi32>
    %185 = arith.cmpi slt, %184, %12 : vector<8x32xi32>
    %186 = arith.select %185, %181, %163 : vector<8x32xi1>, vector<8x32xf32>
    %187 = arith.select %185, %183, %164 : vector<8x32xi1>, vector<8x32xf32>
    %c7_i32 = arith.constant 7 : i32
    %c8_i32_35 = arith.constant 8 : i32
    %188 = arith.muli %c7_i32, %c8_i32_35 : i32
    %189 = tpu.assume_multiple %188, 8 : i32
    %190 = arith.index_cast %189 : i32 to index
    %c0_36 = arith.constant 0 : index
    %191 = vector.load %arg8[%190, %c0_36] : memref<64x128xf32, #tpu.memory_space<vmem>>, vector<8x128xf32>
    %cst_37 = arith.constant dense<0.000000e+00> : vector<8x128xf32>
    %192 = tpu.matmul %187, %9, %cst_37 {dimension_numbers = #tpu.dot_dimension_numbers<[1], [0], [0], [1], [0, 0, 1, 1], [], []>} : vector<8x32xf32>, vector<32x128xf32>, vector<8x128xf32> -> vector<8x128xf32>
    %193 = arith.addf %191, %192 : vector<8x128xf32>
    %194 = arith.mulf %21, %193 : vector<8x128xf32>
    %195 = math.tanh %194 : vector<8x128xf32>
    %196 = arith.mulf %21, %195 : vector<8x128xf32>
    %197 = arith.addf %196, %24 : vector<8x128xf32>
    %198 = vector.extract_strided_slice %197 {offsets = [0, 0], sizes = [8, 32], strides = [1, 1]} : vector<8x128xf32> to vector<8x32xf32>
    %199 = vector.extract_strided_slice %197 {offsets = [0, 32], sizes = [8, 32], strides = [1, 1]} : vector<8x128xf32> to vector<8x32xf32>
    %200 = vector.extract_strided_slice %197 {offsets = [0, 64], sizes = [8, 32], strides = [1, 1]} : vector<8x128xf32> to vector<8x32xf32>
    %201 = vector.extract_strided_slice %197 {offsets = [0, 96], sizes = [8, 32], strides = [1, 1]} : vector<8x128xf32> to vector<8x32xf32>
    %202 = arith.mulf %199, %186 : vector<8x32xf32>
    %203 = arith.mulf %198, %200 : vector<8x32xf32>
    %204 = arith.addf %202, %203 : vector<8x32xf32>
    %205 = math.tanh %204 : vector<8x32xf32>
    %206 = arith.mulf %201, %205 : vector<8x32xf32>
    %207 = vector.broadcast %c7_i32 : i32 to vector<8x32xi32>
    %208 = arith.cmpi slt, %207, %12 : vector<8x32xi32>
    %209 = arith.select %208, %204, %186 : vector<8x32xi1>, vector<8x32xf32>
    %210 = arith.select %208, %206, %187 : vector<8x32xi1>, vector<8x32xf32>
    %c8_i32_38 = arith.constant 8 : i32
    %c0_39 = arith.constant 0 : index
    %c0_40 = arith.constant 0 : index
    %211 = vector.load %arg5[%c0_39, %c0_40] : memref<1x32xf32, #tpu.memory_space<vmem>>, vector<1x32xf32>
    %212 = vector.broadcast %211 : vector<1x32xf32> to vector<8x32xf32>
    %213 = arith.mulf %210, %212 : vector<8x32xf32>
    %cst_41 = arith.constant dense<0.000000e+00> : vector<8xf32>
    %214 = vector.multi_reduction <add>, %213, %cst_41 [1] : vector<8x32xf32> to vector<8xf32>
    %215 = vector.shape_cast %214 : vector<8xf32> to vector<8x1xf32>
    %c0_42 = arith.constant 0 : index
    %c0_43 = arith.constant 0 : index
    %216 = vector.load %arg6[%c0_42, %c0_43] : memref<1x1xf32, #tpu.memory_space<vmem>>, vector<1x1xf32>
    %217 = vector.broadcast %216 : vector<1x1xf32> to vector<8x1xf32>
    %218 = arith.addf %215, %217 : vector<8x1xf32>
    %c0_44 = arith.constant 0 : index
    %c0_45 = arith.constant 0 : index
    %219 = vector.load %arg7[%c0_44, %c0_45] : memref<8x1xf32, #tpu.memory_space<vmem>>, vector<8x1xf32>
    tpu.vector_store %arg7[%c0_44, %c0_45], %218 {strides = array<i32>} : memref<8x1xf32, #tpu.memory_space<vmem>>, vector<8x1xf32>,
    return
  }
  func.func @transform_0(%arg0: i32) -> (i32, i32) {
    %c0_i32 = arith.constant 0 : i32
    %c0_i32_0 = arith.constant 0 : i32
    %c0_i32_1 = arith.constant 0 : i32
    return %c0_i32, %c0_i32_0 : i32, i32
  }
  func.func @transform_1(%arg0: i32) -> (i32, i32) {
    %c0_i32 = arith.constant 0 : i32
    %c0_i32_0 = arith.constant 0 : i32
    %c0_i32_1 = arith.constant 0 : i32
    return %c0_i32, %c0_i32_0 : i32, i32
  }
  func.func @transform_2(%arg0: i32) -> (i32, i32) {
    %c0_i32 = arith.constant 0 : i32
    %c0_i32_0 = arith.constant 0 : i32
    %c0_i32_1 = arith.constant 0 : i32
    return %c0_i32, %c0_i32_0 : i32, i32
  }
  func.func @transform_3(%arg0: i32) -> (i32, i32) {
    %c0_i32 = arith.constant 0 : i32
    %c0_i32_0 = arith.constant 0 : i32
    %c0_i32_1 = arith.constant 0 : i32
    return %c0_i32, %c0_i32_0 : i32, i32
  }
  func.func @transform_4(%arg0: i32) -> (i32, i32) {
    %c0_i32 = arith.constant 0 : i32
    %c0_i32_0 = arith.constant 0 : i32
    %c0_i32_1 = arith.constant 0 : i32
    return %c0_i32, %c0_i32_0 : i32, i32
  }
  func.func @transform_5(%arg0: i32) -> (i32, i32) {
    %c0_i32 = arith.constant 0 : i32
    %c0_i32_0 = arith.constant 0 : i32
    %c0_i32_1 = arith.constant 0 : i32
    return %c0_i32, %c0_i32_0 : i32, i32
  }
  func.func @transform_6(%arg0: i32) -> (i32, i32) {
    %c0_i32 = arith.constant 0 : i32
    %c0_i32_0 = arith.constant 0 : i32
    %c0_i32_1 = arith.constant 0 : i32
    return %c0_i32, %c0_i32_0 : i32, i32
  }
}

</mosaic_0001>

<llo_original>
// kernel: rnn_forward.1
$region0: #{rnn_forward.1}
  #allocation0 [shape = 'u32[]', space=smem, size = 0x4, offset = 0x4, fixed_abs, tag = 'smem constant byte address 0x4 - core index']
  #allocation1 [shape = 'u32[144,128]{1,0:T(1,128)}', space=vmem, size = 0x12000, scoped, tag = 'internal scratch']
  #allocation2 [shape = 'f32[64,128]{1,0:T(8,128)}', space=vmem, size = 0x8000, scoped, tag = 'scratch operand']
  #allocation3 [shape = 'f32[1,1]{1,0:T(1,128)S(1)}', space=vmem, size = 0x200, scoped, tag = 'scoped memory for rnn_forward.1']
  %s0 = inlined_call_operand.vmem [shape: s32[64,1], index: 0, kind: input, shape index: {}]
  %s1 = inlined_call_operand.vmem [shape: s32[8,1], index: 1, kind: input, shape index: {}]
  %s2 = inlined_call_operand.hbm [shape: f32[128,128], index: 2, kind: input, shape index: {}]
  %s3 = inlined_call_operand.vmem [shape: f32[32,128], index: 3, kind: input, shape index: {}]
  %s4 = inlined_call_operand.vmem [shape: f32[1,32], index: 4, kind: input, shape index: {}]
  %s5 = inlined_call_operand.<no memory space> [shape: f32[1,1], index: 5, kind: input, shape index: {}]
  %s6 = inlined_call_operand.vmem [shape: f32[8,1], index: 6, kind: output, shape index: {}]
  %s7 = sld [smem:[#allocation0]]
  $region38: #{rnn_forward.1} parent=0
    _
  %s9 = ssub.s32 1, %s7
  %s10 = scalar_select 0, %s9, %s7
  %v11 = vstv %s5
  %12 = vst [vmem:[#allocation3] sm:$0x1] %v11
  $region1: #{rnn_forward.1} parent=0
    #allocation4 [shape = 'u8[65536]{0}', space=vmem, size = 0x10000, scoped, tag = 'input window, operand 2, single buffered']
    #allocation5 [shape = 's32[1]{0}', space=sflag, size = 0x4, scoped, tag = 'scoped memory for rnn_forward.1']
    %13 = vsyncpa [#allocation5], 0
    // Predicated region
    $region2: #{rnn_forward.1} parent=1 // pred_check
      _
    $region3: #{rnn_forward.1} parent=1 // pred_check_branch
      %15 = sbr.rel (0) target = $region5
    $region4: #{rnn_forward.1} parent=1 // pred_region
      _
    $region5: #{rnn_forward.1} parent=1 // pred_fallthru
      _
    // Predicated region
    $region6: #{rnn_forward.1} parent=1 // pred_check
      _
    $region7: #{rnn_forward.1} parent=1 // pred_check_branch
      %17 = sbr.rel (0) target = $region9
    $region8: #{rnn_forward.1} parent=1 // pred_region
      _
    $region9: #{rnn_forward.1} parent=1 // pred_fallthru
      _
    // Predicated region
    $region10: #{rnn_forward.1} parent=1 // pred_check
      _
    $region11: #{rnn_forward.1} parent=1 // pred_check_branch
      %19 = sbr.rel (0) target = $region13
    $region12: #{rnn_forward.1} parent=1 // pred_region
      %s21 = ssub.s32 2048, 2048
      %22 = vsyncadd [#allocation5], %s21
      %s23 = sshll.u32 [#allocation4], 4
      %s24 = int_to_ptr.vmem [resolvable:$true] %s23
      %29 = dma.hbm_to_vmem [thread:$0]  %s2, 2048, %s24, [#allocation5], 128, 128, 8
    $region13: #{rnn_forward.1} parent=1 // pred_fallthru
      _
    // Predicated region
    $region14: #{rnn_forward.1} parent=1 // pred_check
      _
    $region15: #{rnn_forward.1} parent=1 // pred_check_branch
      %31 = sbr.rel (0) target = $region17
    $region16: #{rnn_forward.1} parent=1 // pred_region
      _
    $region17: #{rnn_forward.1} parent=1 // pred_fallthru
      _
    // Predicated region
    $region18: #{rnn_forward.1} parent=1 // pred_check
      _
    $region19: #{rnn_forward.1} parent=1 // pred_check_branch
      %33 = sbr.rel (0) target = $region21
    $region20: #{rnn_forward.1} parent=1 // pred_region
      _
    $region21: #{rnn_forward.1} parent=1 // pred_fallthru
      _
    // Predicated region
    $region22: #{rnn_forward.1} parent=1 // pred_check
      _
    $region23: #{rnn_forward.1} parent=1 // pred_check_branch
      %35 = sbr.rel (0) target = $region25
    $region24: #{rnn_forward.1} parent=1 // pred_region
      _
    $region25: #{rnn_forward.1} parent=1 // pred_fallthru
      _
    // Predicated region
    $region26: #{rnn_forward.1} parent=1 // pred_check
      _
    $region27: #{rnn_forward.1} parent=1 // pred_check_branch
      %37 = sbr.rel (0) target = $region29
    $region28: #{rnn_forward.1} parent=1 // pred_region
      %38 = dma.done [#allocation5], 2048
    $region29: #{rnn_forward.1} parent=1 // pred_fallthru
      _
    %v39 = vld [vmem:[%s0] sm:$0xff]
    %v40 = vld [vmem:[%s0 + $0x8] sm:$0xff]
    %v41 = vld [vmem:[%s0 + $0x10] sm:$0xff]
    %v42 = vld [vmem:[%s0 + $0x18] sm:$0xff]
    %v43 = vld [vmem:[%s0 + $0x20] sm:$0xff]
    %v44 = vld [vmem:[%s0 + $0x28] sm:$0xff]
    %v45 = vld [vmem:[%s0 + $0x30] sm:$0xff]
    %v46 = vld [vmem:[%s0 + $0x38] sm:$0xff]
    %v47 = vlaneseq
    %v48 = vand.u32 %v47, 127
    %49 = vset.pattern.permute.xlu0 0
    %50 = vperm.xlu0 %49, %v39
    %v51 = vpop.permute.xlu0 %50
    %52 = vset.pattern.permute.xlu0 0
    %53 = vperm.xlu0 %52, %v40
    %v54 = vpop.permute.xlu0 %53
    %55 = vset.pattern.permute.xlu0 0
    %56 = vperm.xlu0 %55, %v41
    %v57 = vpop.permute.xlu0 %56
    %58 = vset.pattern.permute.xlu0 0
    %59 = vperm.xlu0 %58, %v42
    %v60 = vpop.permute.xlu0 %59
    %61 = vset.pattern.permute.xlu0 0
    %62 = vperm.xlu0 %61, %v43
    %v63 = vpop.permute.xlu0 %62
    %64 = vset.pattern.permute.xlu0 0
    %65 = vperm.xlu0 %64, %v44
    %v66 = vpop.permute.xlu0 %65
    %67 = vset.pattern.permute.xlu0 0
    %68 = vperm.xlu0 %67, %v45
    %v69 = vpop.permute.xlu0 %68
    %70 = vset.pattern.permute.xlu0 0
    %71 = vperm.xlu0 %70, %v46
    %v72 = vpop.permute.xlu0 %71
    %vm73 = vcmp.eq.s32.totalorder %v48, %v51
    %vm74 = vcmp.eq.s32.totalorder %v48, %v54
    %vm75 = vcmp.eq.s32.totalorder %v48, %v57
    %vm76 = vcmp.eq.s32.totalorder %v48, %v60
    %vm77 = vcmp.eq.s32.totalorder %v48, %v63
    %vm78 = vcmp.eq.s32.totalorder %v48, %v66
    %vm79 = vcmp.eq.s32.totalorder %v48, %v69
    %vm80 = vcmp.eq.s32.totalorder %v48, %v72
    %v81 = vsel %vm73, 1, 0
    %v82 = vsel %vm74, 1, 0
    %v83 = vsel %vm75, 1, 0
    %v84 = vsel %vm76, 1, 0
    %v85 = vsel %vm77, 1, 0
    %v86 = vsel %vm78, 1, 0
    %v87 = vsel %vm79, 1, 0
    %v88 = vsel %vm80, 1, 0
    %v89 = vcvt.s32.f32 %v81
    %v90 = vcvt.s32.f32 %v82
    %v91 = vcvt.s32.f32 %v83
    %v92 = vcvt.s32.f32 %v84
    %v93 = vcvt.s32.f32 %v85
    %v94 = vcvt.s32.f32 %v86
    %v95 = vcvt.s32.f32 %v87
    %v96 = vcvt.s32.f32 %v88
    %v97 = vld [vmem:[#allocation4] sm:$0xff]
    %v98 = vld [vmem:[#allocation4 + $0x8] sm:$0xff]
    %v99 = vld [vmem:[#allocation4 + $0x10] sm:$0xff]
    %v100 = vld [vmem:[#allocation4 + $0x18] sm:$0xff]
    %v101 = vld [vmem:[#allocation4 + $0x20] sm:$0xff]
    %v102 = vld [vmem:[#allocation4 + $0x28] sm:$0xff]
    %v103 = vld [vmem:[#allocation4 + $0x30] sm:$0xff]
    %v104 = vld [vmem:[#allocation4 + $0x38] sm:$0xff]
    %v105 = vld [vmem:[#allocation4 + $0x40] sm:$0xff]
    %v106 = vld [vmem:[#allocation4 + $0x48] sm:$0xff]
    %v107 = vld [vmem:[#allocation4 + $0x50] sm:$0xff]
    %v108 = vld [vmem:[#allocation4 + $0x58] sm:$0xff]
    %v109 = vld [vmem:[#allocation4 + $0x60] sm:$0xff]
    %v110 = vld [vmem:[#allocation4 + $0x68] sm:$0xff]
    %v111 = vld [vmem:[#allocation4 + $0x70] sm:$0xff]
    %v112 = vld [vmem:[#allocation4 + $0x78] sm:$0xff]
    %113 = vmatprep.subr.mxu0 0.0
    %114 = vmatpush1.msra.mxu0 %v97
    %115 = vmatprep.subr.mxu0 0.0
    %116 = vmatpush1.msra.mxu0 %v98
    %117 = vmatprep.subr.mxu0 0.0
    %118 = vmatpush1.msra.mxu0 %v99
    %119 = vmatprep.subr.mxu0 0.0
    %120 = vmatpush1.msra.mxu0 %v100
    %121 = vmatprep.subr.mxu0 0.0
    %122 = vmatpush1.msra.mxu0 %v101
    %123 = vmatprep.subr.mxu0 0.0
    %124 = vmatpush1.msra.mxu0 %v102
    %125 = vmatprep.subr.mxu0 0.0
    %126 = vmatpush1.msra.mxu0 %v103
    %127 = vmatprep.subr.mxu0 0.0
    %128 = vmatpush1.msra.mxu0 %v104
    %129 = vmatprep.subr.mxu0 0.0
    %130 = vmatpush1.msra.mxu0 %v105
    %131 = vmatprep.subr.mxu0 0.0
    %132 = vmatpush1.msra.mxu0 %v106
    %133 = vmatprep.subr.mxu0 0.0
    %134 = vmatpush1.msra.mxu0 %v107
    %135 = vmatprep.subr.mxu0 0.0
    %136 = vmatpush1.msra.mxu0 %v108
    %137 = vmatprep.subr.mxu0 0.0
    %138 = vmatpush1.msra.mxu0 %v109
    %139 = vmatprep.subr.mxu0 0.0
    %140 = vmatpush1.msra.mxu0 %v110
    %141 = vmatprep.subr.mxu0 0.0
    %142 = vmatpush1.msra.mxu0 %v111
    %143 = vmatprep.subr.mxu0 0.0
    %144 = vmatpush1.msra.mxu0 %v112
    %145 = vmatprep.subr.mxu0 0.0
    %146 = vmatpush1.msra.mxu0 0.0
    %147 = vmatprep.subr.mxu0 0.0
    %148 = vmatpush1.msra.mxu0 0.0
    %149 = vmatprep.subr.mxu0 0.0
    %150 = vmatpush1.msra.mxu0 0.0
    %151 = vmatprep.subr.mxu0 0.0
    %152 = vmatpush1.msra.mxu0 0.0
    %153 = vmatprep.subr.mxu0 0.0
    %154 = vmatpush1.msra.mxu0 0.0
    %155 = vmatprep.subr.mxu0 0.0
    %156 = vmatpush1.msra.mxu0 0.0
    %157 = vmatprep.subr.mxu0 0.0
    %158 = vmatpush1.msra.mxu0 0.0
    %159 = vmatprep.subr.mxu0 0.0
    %160 = vmatpush1.msra.mxu0 0.0
    %161 = vmatprep.subr.mxu0 0.0
    %162 = vmatpush1.msra.mxu0 0.0
    %163 = vmatprep.subr.mxu0 0.0
    %164 = vmatpush1.msra.mxu0 0.0
    %165 = vmatprep.subr.mxu0 0.0
    %166 = vmatpush1.msra.mxu0 0.0
    %167 = vmatprep.subr.mxu0 0.0
    %168 = vmatpush1.msra.mxu0 0.0
    %169 = vmatprep.subr.mxu0 0.0
    %170 = vmatpush1.msra.mxu0 0.0
    %171 = vmatprep.subr.mxu0 0.0
    %172 = vmatpush1.msra.mxu0 0.0
    %173 = vmatprep.subr.mxu0 0.0
    %174 = vmatpush1.msra.mxu0 0.0
    %175 = vmatprep.subr.mxu0 0.0
    %176 = vmatpush1.msra.mxu0 0.0
    %177 = vmatprep.mubr.f32.mxu0 0.0
    %178 = vmatmul.mubr.f32.gmra.mrb[0].mxu0 %v89
    %v179 = vpop.f32.mrb[0].mxu0
    %v180 = vadd.f32 0.0, %v179
    %v181 = vpop.f32.mrb[0].mxu0
    %182 = vmatprep.mubr.f32.mxu0 0.0
    %183 = vmatmul.mubr.f32.gmra.mrb[0].mxu0 %v90
    %v184 = vpop.f32.mrb[0].mxu0
    %v185 = vadd.f32 0.0, %v184
    %v186 = vpop.f32.mrb[0].mxu0
    %187 = vmatprep.mubr.f32.mxu0 0.0
    %188 = vmatmul.mubr.f32.gmra.mrb[0].mxu0 %v91
    %v189 = vpop.f32.mrb[0].mxu0
    %v190 = vadd.f32 0.0, %v189
    %v191 = vpop.f32.mrb[0].mxu0
    %192 = vmatprep.mubr.f32.mxu0 0.0
    %193 = vmatmul.mubr.f32.gmra.mrb[0].mxu0 %v92
    %v194 = vpop.f32.mrb[0].mxu0
    %v195 = vadd.f32 0.0, %v194
    %v196 = vpop.f32.mrb[0].mxu0
    %197 = vmatprep.mubr.f32.mxu0 0.0
    %198 = vmatmul.mubr.f32.gmra.mrb[0].mxu0 %v93
    %v199 = vpop.f32.mrb[0].mxu0
    %v200 = vadd.f32 0.0, %v199
    %v201 = vpop.f32.mrb[0].mxu0
    %202 = vmatprep.mubr.f32.mxu0 0.0
    %203 = vmatmul.mubr.f32.gmra.mrb[0].mxu0 %v94
    %v204 = vpop.f32.mrb[0].mxu0
    %v205 = vadd.f32 0.0, %v204
    %v206 = vpop.f32.mrb[0].mxu0
    %207 = vmatprep.mubr.f32.mxu0 0.0
    %208 = vmatmul.mubr.f32.gmra.mrb[0].mxu0 %v95
    %v209 = vpop.f32.mrb[0].mxu0
    %v210 = vadd.f32 0.0, %v209
    %v211 = vpop.f32.mrb[0].mxu0
    %212 = vmatprep.mubr.f32.mxu0 0.0
    %213 = vmatmul.mubr.f32.gmra.mrb[0].mxu0 %v96
    %v214 = vpop.f32.mrb[0].mxu0
    %v215 = vadd.f32 0.0, %v214
    %v216 = vpop.f32.mrb[0].mxu0
    %217 = vdwg.mxu0
    %218 = vst [vmem:[#allocation2] sm:$0xff] %v180
    %219 = vst [vmem:[#allocation2 + $0x8] sm:$0xff] %v185
    %220 = vst [vmem:[#allocation2 + $0x10] sm:$0xff] %v190
    %221 = vst [vmem:[#allocation2 + $0x18] sm:$0xff] %v195
    %222 = vst [vmem:[#allocation2 + $0x20] sm:$0xff] %v200
    %223 = vst [vmem:[#allocation2 + $0x28] sm:$0xff] %v205
    %224 = vst [vmem:[#allocation2 + $0x30] sm:$0xff] %v210
    %225 = vst [vmem:[#allocation2 + $0x38] sm:$0xff] %v215
    %v226 = vld [vmem:[%s3] sm:$0xff]
    %v227 = vld [vmem:[%s3 + $0x8] sm:$0xff]
    %v228 = vld [vmem:[%s3 + $0x10] sm:$0xff]
    %v229 = vld [vmem:[%s3 + $0x18] sm:$0xff]
    %v230 = vld [vmem:[%s1] sm:$0xff]
    %231 = vset.pattern.permute.xlu0 0
    %232 = vperm.xlu0 %231, %v230
    %v233 = vpop.permute.xlu0 %232
    %vm234 = vcmp.ge.s32.totalorder %v48, 64
    %vm235 = vcmp.lt.s32.totalorder %v48, 96
    %vm236 = vmand %vm234, %vm235
    %v237 = vsel %vm236, 1.0, 0.5
    %v238 = vsel %vm236, 0.0, 0.5
    %v239 = vld [vmem:[#allocation2] sm:$0xff]
    %vm240 = vcmask 261120
    %v242 = vsel %vm240, 0.0, 0
    %244 = vmatprep.subr.mxu0 0.0
    %245 = vmatpush1.msra.mxu0 %v226
    %246 = vmatprep.subr.mxu0 0.0
    %247 = vmatpush1.msra.mxu0 %v227
    %248 = vmatprep.subr.mxu0 0.0
    %249 = vmatpush1.msra.mxu0 %v228
    %250 = vmatprep.subr.mxu0 0.0
    %251 = vmatpush1.msra.mxu0 %v229
    %252 = vmatprep.subr.mxu0 0.0
    %253 = vmatpush1.msra.mxu0 0.0
    %254 = vmatprep.subr.mxu0 0.0
    %255 = vmatpush1.msra.mxu0 0.0
    %256 = vmatprep.subr.mxu0 0.0
    %257 = vmatpush1.msra.mxu0 0.0
    %258 = vmatprep.subr.mxu0 0.0
    %259 = vmatpush1.msra.mxu0 0.0
    %260 = vmatprep.subr.mxu0 0.0
    %261 = vmatpush1.msra.mxu0 0.0
    %262 = vmatprep.subr.mxu0 0.0
    %263 = vmatpush1.msra.mxu0 0.0
    %264 = vmatprep.subr.mxu0 0.0
    %265 = vmatpush1.msra.mxu0 0.0
    %266 = vmatprep.subr.mxu0 0.0
    %267 = vmatpush1.msra.mxu0 0.0
    %268 = vmatprep.subr.mxu0 0.0
    %269 = vmatpush1.msra.mxu0 0.0
    %270 = vmatprep.subr.mxu0 0.0
    %271 = vmatpush1.msra.mxu0 0.0
    %272 = vmatprep.subr.mxu0 0.0
    %273 = vmatpush1.msra.mxu0 0.0
    %274 = vmatprep.subr.mxu0 0.0
    %275 = vmatpush1.msra.mxu0 0.0
    %276 = vmatprep.subr.mxu0 0.0
    %277 = vmatpush1.msra.mxu0 0.0
    %278 = vmatprep.subr.mxu0 0.0
    %279 = vmatpush1.msra.mxu0 0.0
    %280 = vmatprep.subr.mxu0 0.0
    %281 = vmatpush1.msra.mxu0 0.0
    %282 = vmatprep.subr.mxu0 0.0
    %283 = vmatpush1.msra.mxu0 0.0
    %284 = vmatprep.subr.mxu0 0.0
    %285 = vmatpush1.msra.mxu0 0.0
    %286 = vmatprep.subr.mxu0 0.0
    %287 = vmatpush1.msra.mxu0 0.0
    %288 = vmatprep.subr.mxu0 0.0
    %289 = vmatpush1.msra.mxu0 0.0
    %290 = vmatprep.subr.mxu0 0.0
    %291 = vmatpush1.msra.mxu0 0.0
    %292 = vmatprep.subr.mxu0 0.0
    %293 = vmatpush1.msra.mxu0 0.0
    %294 = vmatprep.subr.mxu0 0.0
    %295 = vmatpush1.msra.mxu0 0.0
    %296 = vmatprep.subr.mxu0 0.0
    %297 = vmatpush1.msra.mxu0 0.0
    %298 = vmatprep.subr.mxu0 0.0
    %299 = vmatpush1.msra.mxu0 0.0
    %300 = vmatprep.subr.mxu0 0.0
    %301 = vmatpush1.msra.mxu0 0.0
    %302 = vmatprep.subr.mxu0 0.0
    %303 = vmatpush1.msra.mxu0 0.0
    %304 = vmatprep.subr.mxu0 0.0
    %305 = vmatpush1.msra.mxu0 0.0
    %306 = vmatprep.subr.mxu0 0.0
    %307 = vmatpush1.msra.mxu0 0.0
    %308 = vmatprep.mubr.f32.mxu0 0.0
    %309 = vmatmul.mubr.f32.gmra.mrb[0].mxu0 %v242
    %v310 = vpop.f32.mrb[0].mxu0
    %v311 = vadd.f32 0.0, %v310
    %v312 = vpop.f32.mrb[0].mxu0
    %313 = vdwg.mxu0
    %v314 = vadd.f32 %v239, %v311
    %v315 = vmul.f32 %v237, %v314
    %v316 = vtanh.pop %v315
    %v317 = vmul.f32 %v237, %v316
    %v318 = vadd.f32 %v317, %v238
    %v319 = vmul.f32 %v318, 0.0
    %321 = vrot.lane.b32.xlu0 %v318, 64
    %v322 = vpop.permute.xlu0 %321
    %v324 = vmul.f32 %v318, %v322
    %326 = vrot.lane.b32.xlu0 %v324, 32
    %v327 = vpop.permute.xlu0 %326
    %v329 = vadd.f32 %v319, %v327
    %v330 = vtanh.pop %v329
    %332 = vrot.lane.b32.xlu0 %v330, 64
    %v333 = vpop.permute.xlu0 %332
    %v335 = vmul.f32 %v318, %v333
    %vm336 = vcmp.gt.s32.totalorder %v233, 0
    %v337 = vsel %vm336, %v329, 0.0
    %v338 = vsel %vm336, %v335, 0.0
    %s339 = scalar_lea.vmem [#allocation2], 8
    %v340 = vld [vmem:[%s339] sm:$0xff]
    %342 = vrot.lane.b32.xlu0 %v338, 32
    %v343 = vpop.permute.xlu0 %342
    %v344 = vsel %vm240, %v343, 0
    %346 = vmatprep.subr.mxu0 0.0
    %347 = vmatpush1.msra.mxu0 %v226
    %348 = vmatprep.subr.mxu0 0.0
    %349 = vmatpush1.msra.mxu0 %v227
    %350 = vmatprep.subr.mxu0 0.0
    %351 = vmatpush1.msra.mxu0 %v228
    %352 = vmatprep.subr.mxu0 0.0
    %353 = vmatpush1.msra.mxu0 %v229
    %354 = vmatprep.subr.mxu0 0.0
    %355 = vmatpush1.msra.mxu0 0.0
    %356 = vmatprep.subr.mxu0 0.0
    %357 = vmatpush1.msra.mxu0 0.0
    %358 = vmatprep.subr.mxu0 0.0
    %359 = vmatpush1.msra.mxu0 0.0
    %360 = vmatprep.subr.mxu0 0.0
    %361 = vmatpush1.msra.mxu0 0.0
    %362 = vmatprep.subr.mxu0 0.0
    %363 = vmatpush1.msra.mxu0 0.0
    %364 = vmatprep.subr.mxu0 0.0
    %365 = vmatpush1.msra.mxu0 0.0
    %366 = vmatprep.subr.mxu0 0.0
    %367 = vmatpush1.msra.mxu0 0.0
    %368 = vmatprep.subr.mxu0 0.0
    %369 = vmatpush1.msra.mxu0 0.0
    %370 = vmatprep.subr.mxu0 0.0
    %371 = vmatpush1.msra.mxu0 0.0
    %372 = vmatprep.subr.mxu0 0.0
    %373 = vmatpush1.msra.mxu0 0.0
    %374 = vmatprep.subr.mxu0 0.0
    %375 = vmatpush1.msra.mxu0 0.0
    %376 = vmatprep.subr.mxu0 0.0
    %377 = vmatpush1.msra.mxu0 0.0
    %378 = vmatprep.subr.mxu0 0.0
    %379 = vmatpush1.msra.mxu0 0.0
    %380 = vmatprep.subr.mxu0 0.0
    %381 = vmatpush1.msra.mxu0 0.0
    %382 = vmatprep.subr.mxu0 0.0
    %383 = vmatpush1.msra.mxu0 0.0
    %384 = vmatprep.subr.mxu0 0.0
    %385 = vmatpush1.msra.mxu0 0.0
    %386 = vmatprep.subr.mxu0 0.0
    %387 = vmatpush1.msra.mxu0 0.0
    %388 = vmatprep.subr.mxu0 0.0
    %389 = vmatpush1.msra.mxu0 0.0
    %390 = vmatprep.subr.mxu0 0.0
    %391 = vmatpush1.msra.mxu0 0.0
    %392 = vmatprep.subr.mxu0 0.0
    %393 = vmatpush1.msra.mxu0 0.0
    %394 = vmatprep.subr.mxu0 0.0
    %395 = vmatpush1.msra.mxu0 0.0
    %396 = vmatprep.subr.mxu0 0.0
    %397 = vmatpush1.msra.mxu0 0.0
    %398 = vmatprep.subr.mxu0 0.0
    %399 = vmatpush1.msra.mxu0 0.0
    %400 = vmatprep.subr.mxu0 0.0
    %401 = vmatpush1.msra.mxu0 0.0
    %402 = vmatprep.subr.mxu0 0.0
    %403 = vmatpush1.msra.mxu0 0.0
    %404 = vmatprep.subr.mxu0 0.0
    %405 = vmatpush1.msra.mxu0 0.0
    %406 = vmatprep.subr.mxu0 0.0
    %407 = vmatpush1.msra.mxu0 0.0
    %408 = vmatprep.subr.mxu0 0.0
    %409 = vmatpush1.msra.mxu0 0.0
    %410 = vmatprep.mubr.f32.mxu0 0.0
    %411 = vmatmul.mubr.f32.gmra.mrb[0].mxu0 %v344
    %v412 = vpop.f32.mrb[0].mxu0
    %v413 = vadd.f32 0.0, %v412
    %v414 = vpop.f32.mrb[0].mxu0
    %415 = vdwg.mxu0
    %v416 = vadd.f32 %v340, %v413
    %v417 = vmul.f32 %v237, %v416
    %v418 = vtanh.pop %v417
    %v419 = vmul.f32 %v237, %v418
    %v420 = vadd.f32 %v419, %v238
    %v421 = vmul.f32 %v420, %v337
    %423 = vrot.lane.b32.xlu0 %v420, 64
    %v424 = vpop.permute.xlu0 %423
    %v426 = vmul.f32 %v420, %v424
    %428 = vrot.lane.b32.xlu0 %v426, 32
    %v429 = vpop.permute.xlu0 %428
    %v431 = vadd.f32 %v421, %v429
    %v432 = vtanh.pop %v431
    %434 = vrot.lane.b32.xlu0 %v432, 64
    %v435 = vpop.permute.xlu0 %434
    %v437 = vmul.f32 %v420, %v435
    %vm438 = vcmp.gt.s32.totalorder %v233, 1
    %v439 = vsel %vm438, %v431, %v337
    %v440 = vsel %vm438, %v437, %v338
    %s441 = scalar_lea.vmem [#allocation2], 16
    %v442 = vld [vmem:[%s441] sm:$0xff]
    %444 = vrot.lane.b32.xlu0 %v440, 32
    %v445 = vpop.permute.xlu0 %444
    %v446 = vsel %vm240, %v445, 0
    %448 = vmatprep.subr.mxu0 0.0
    %449 = vmatpush1.msra.mxu0 %v226
    %450 = vmatprep.subr.mxu0 0.0
    %451 = vmatpush1.msra.mxu0 %v227
    %452 = vmatprep.subr.mxu0 0.0
    %453 = vmatpush1.msra.mxu0 %v228
    %454 = vmatprep.subr.mxu0 0.0
    %455 = vmatpush1.msra.mxu0 %v229
    %456 = vmatprep.subr.mxu0 0.0
    %457 = vmatpush1.msra.mxu0 0.0
    %458 = vmatprep.subr.mxu0 0.0
    %459 = vmatpush1.msra.mxu0 0.0
    %460 = vmatprep.subr.mxu0 0.0
    %461 = vmatpush1.msra.mxu0 0.0
    %462 = vmatprep.subr.mxu0 0.0
    %463 = vmatpush1.msra.mxu0 0.0
    %464 = vmatprep.subr.mxu0 0.0
    %465 = vmatpush1.msra.mxu0 0.0
    %466 = vmatprep.subr.mxu0 0.0
    %467 = vmatpush1.msra.mxu0 0.0
    %468 = vmatprep.subr.mxu0 0.0
    %469 = vmatpush1.msra.mxu0 0.0
    %470 = vmatprep.subr.mxu0 0.0
    %471 = vmatpush1.msra.mxu0 0.0
    %472 = vmatprep.subr.mxu0 0.0
    %473 = vmatpush1.msra.mxu0 0.0
    %474 = vmatprep.subr.mxu0 0.0
    %475 = vmatpush1.msra.mxu0 0.0
    %476 = vmatprep.subr.mxu0 0.0
    %477 = vmatpush1.msra.mxu0 0.0
    %478 = vmatprep.subr.mxu0 0.0
    %479 = vmatpush1.msra.mxu0 0.0
    %480 = vmatprep.subr.mxu0 0.0
    %481 = vmatpush1.msra.mxu0 0.0
    %482 = vmatprep.subr.mxu0 0.0
    %483 = vmatpush1.msra.mxu0 0.0
    %484 = vmatprep.subr.mxu0 0.0
    %485 = vmatpush1.msra.mxu0 0.0
    %486 = vmatprep.subr.mxu0 0.0
    %487 = vmatpush1.msra.mxu0 0.0
    %488 = vmatprep.subr.mxu0 0.0
    %489 = vmatpush1.msra.mxu0 0.0
    %490 = vmatprep.subr.mxu0 0.0
    %491 = vmatpush1.msra.mxu0 0.0
    %492 = vmatprep.subr.mxu0 0.0
    %493 = vmatpush1.msra.mxu0 0.0
    %494 = vmatprep.subr.mxu0 0.0
    %495 = vmatpush1.msra.mxu0 0.0
    %496 = vmatprep.subr.mxu0 0.0
    %497 = vmatpush1.msra.mxu0 0.0
    %498 = vmatprep.subr.mxu0 0.0
    %499 = vmatpush1.msra.mxu0 0.0
    %500 = vmatprep.subr.mxu0 0.0
    %501 = vmatpush1.msra.mxu0 0.0
    %502 = vmatprep.subr.mxu0 0.0
    %503 = vmatpush1.msra.mxu0 0.0
    %504 = vmatprep.subr.mxu0 0.0
    %505 = vmatpush1.msra.mxu0 0.0
    %506 = vmatprep.subr.mxu0 0.0
    %507 = vmatpush1.msra.mxu0 0.0
    %508 = vmatprep.subr.mxu0 0.0
    %509 = vmatpush1.msra.mxu0 0.0
    %510 = vmatprep.subr.mxu0 0.0
    %511 = vmatpush1.msra.mxu0 0.0
    %512 = vmatprep.mubr.f32.mxu0 0.0
    %513 = vmatmul.mubr.f32.gmra.mrb[0].mxu0 %v446
    %v514 = vpop.f32.mrb[0].mxu0
    %v515 = vadd.f32 0.0, %v514
    %v516 = vpop.f32.mrb[0].mxu0
    %517 = vdwg.mxu0
    %v518 = vadd.f32 %v442, %v515
    %v519 = vmul.f32 %v237, %v518
    %v520 = vtanh.pop %v519
    %v521 = vmul.f32 %v237, %v520
    %v522 = vadd.f32 %v521, %v238
    %v523 = vmul.f32 %v522, %v439
    %525 = vrot.lane.b32.xlu0 %v522, 64
    %v526 = vpop.permute.xlu0 %525
    %v528 = vmul.f32 %v522, %v526
    %530 = vrot.lane.b32.xlu0 %v528, 32
    %v531 = vpop.permute.xlu0 %530
    %v533 = vadd.f32 %v523, %v531
    %v534 = vtanh.pop %v533
    %536 = vrot.lane.b32.xlu0 %v534, 64
    %v537 = vpop.permute.xlu0 %536
    %v539 = vmul.f32 %v522, %v537
    %vm540 = vcmp.gt.s32.totalorder %v233, 2
    %v541 = vsel %vm540, %v533, %v439
    %v542 = vsel %vm540, %v539, %v440
    %s543 = scalar_lea.vmem [#allocation2], 24
    %v544 = vld [vmem:[%s543] sm:$0xff]
    %546 = vrot.lane.b32.xlu0 %v542, 32
    %v547 = vpop.permute.xlu0 %546
    %v548 = vsel %vm240, %v547, 0
    %550 = vmatprep.subr.mxu0 0.0
    %551 = vmatpush1.msra.mxu0 %v226
    %552 = vmatprep.subr.mxu0 0.0
    %553 = vmatpush1.msra.mxu0 %v227
    %554 = vmatprep.subr.mxu0 0.0
    %555 = vmatpush1.msra.mxu0 %v228
    %556 = vmatprep.subr.mxu0 0.0
    %557 = vmatpush1.msra.mxu0 %v229
    %558 = vmatprep.subr.mxu0 0.0
    %559 = vmatpush1.msra.mxu0 0.0
    %560 = vmatprep.subr.mxu0 0.0
    %561 = vmatpush1.msra.mxu0 0.0
    %562 = vmatprep.subr.mxu0 0.0
    %563 = vmatpush1.msra.mxu0 0.0
    %564 = vmatprep.subr.mxu0 0.0
    %565 = vmatpush1.msra.mxu0 0.0
    %566 = vmatprep.subr.mxu0 0.0
    %567 = vmatpush1.msra.mxu0 0.0
    %568 = vmatprep.subr.mxu0 0.0
    %569 = vmatpush1.msra.mxu0 0.0
    %570 = vmatprep.subr.mxu0 0.0
    %571 = vmatpush1.msra.mxu0 0.0
    %572 = vmatprep.subr.mxu0 0.0
    %573 = vmatpush1.msra.mxu0 0.0
    %574 = vmatprep.subr.mxu0 0.0
    %575 = vmatpush1.msra.mxu0 0.0
    %576 = vmatprep.subr.mxu0 0.0
    %577 = vmatpush1.msra.mxu0 0.0
    %578 = vmatprep.subr.mxu0 0.0
    %579 = vmatpush1.msra.mxu0 0.0
    %580 = vmatprep.subr.mxu0 0.0
    %581 = vmatpush1.msra.mxu0 0.0
    %582 = vmatprep.subr.mxu0 0.0
    %583 = vmatpush1.msra.mxu0 0.0
    %584 = vmatprep.subr.mxu0 0.0
    %585 = vmatpush1.msra.mxu0 0.0
    %586 = vmatprep.subr.mxu0 0.0
    %587 = vmatpush1.msra.mxu0 0.0
    %588 = vmatprep.subr.mxu0 0.0
    %589 = vmatpush1.msra.mxu0 0.0
    %590 = vmatprep.subr.mxu0 0.0
    %591 = vmatpush1.msra.mxu0 0.0
    %592 = vmatprep.subr.mxu0 0.0
    %593 = vmatpush1.msra.mxu0 0.0
    %594 = vmatprep.subr.mxu0 0.0
    %595 = vmatpush1.msra.mxu0 0.0
    %596 = vmatprep.subr.mxu0 0.0
    %597 = vmatpush1.msra.mxu0 0.0
    %598 = vmatprep.subr.mxu0 0.0
    %599 = vmatpush1.msra.mxu0 0.0
    %600 = vmatprep.subr.mxu0 0.0
    %601 = vmatpush1.msra.mxu0 0.0
    %602 = vmatprep.subr.mxu0 0.0
    %603 = vmatpush1.msra.mxu0 0.0
    %604 = vmatprep.subr.mxu0 0.0
    %605 = vmatpush1.msra.mxu0 0.0
    %606 = vmatprep.subr.mxu0 0.0
    %607 = vmatpush1.msra.mxu0 0.0
    %608 = vmatprep.subr.mxu0 0.0
    %609 = vmatpush1.msra.mxu0 0.0
    %610 = vmatprep.subr.mxu0 0.0
    %611 = vmatpush1.msra.mxu0 0.0
    %612 = vmatprep.subr.mxu0 0.0
    %613 = vmatpush1.msra.mxu0 0.0
    %614 = vmatprep.mubr.f32.mxu0 0.0
    %615 = vmatmul.mubr.f32.gmra.mrb[0].mxu0 %v548
    %v616 = vpop.f32.mrb[0].mxu0
    %v617 = vadd.f32 0.0, %v616
    %v618 = vpop.f32.mrb[0].mxu0
    %619 = vdwg.mxu0
    %v620 = vadd.f32 %v544, %v617
    %v621 = vmul.f32 %v237, %v620
    %v622 = vtanh.pop %v621
    %v623 = vmul.f32 %v237, %v622
    %v624 = vadd.f32 %v623, %v238
    %v625 = vmul.f32 %v624, %v541
    %627 = vrot.lane.b32.xlu0 %v624, 64
    %v628 = vpop.permute.xlu0 %627
    %v630 = vmul.f32 %v624, %v628
    %632 = vrot.lane.b32.xlu0 %v630, 32
    %v633 = vpop.permute.xlu0 %632
    %v635 = vadd.f32 %v625, %v633
    %v636 = vtanh.pop %v635
    %638 = vrot.lane.b32.xlu0 %v636, 64
    %v639 = vpop.permute.xlu0 %638
    %v641 = vmul.f32 %v624, %v639
    %vm642 = vcmp.gt.s32.totalorder %v233, 3
    %v643 = vsel %vm642, %v635, %v541
    %v644 = vsel %vm642, %v641, %v542
    %s645 = scalar_lea.vmem [#allocation2], 32
    %v646 = vld [vmem:[%s645] sm:$0xff]
    %648 = vrot.lane.b32.xlu0 %v644, 32
    %v649 = vpop.permute.xlu0 %648
    %v650 = vsel %vm240, %v649, 0
    %652 = vmatprep.subr.mxu0 0.0
    %653 = vmatpush1.msra.mxu0 %v226
    %654 = vmatprep.subr.mxu0 0.0
    %655 = vmatpush1.msra.mxu0 %v227
    %656 = vmatprep.subr.mxu0 0.0
    %657 = vmatpush1.msra.mxu0 %v228
    %658 = vmatprep.subr.mxu0 0.0
    %659 = vmatpush1.msra.mxu0 %v229
    %660 = vmatprep.subr.mxu0 0.0
    %661 = vmatpush1.msra.mxu0 0.0
    %662 = vmatprep.subr.mxu0 0.0
    %663 = vmatpush1.msra.mxu0 0.0
    %664 = vmatprep.subr.mxu0 0.0
    %665 = vmatpush1.msra.mxu0 0.0
    %666 = vmatprep.subr.mxu0 0.0
    %667 = vmatpush1.msra.mxu0 0.0
    %668 = vmatprep.subr.mxu0 0.0
    %669 = vmatpush1.msra.mxu0 0.0
    %670 = vmatprep.subr.mxu0 0.0
    %671 = vmatpush1.msra.mxu0 0.0
    %672 = vmatprep.subr.mxu0 0.0
    %673 = vmatpush1.msra.mxu0 0.0
    %674 = vmatprep.subr.mxu0 0.0
    %675 = vmatpush1.msra.mxu0 0.0
    %676 = vmatprep.subr.mxu0 0.0
    %677 = vmatpush1.msra.mxu0 0.0
    %678 = vmatprep.subr.mxu0 0.0
    %679 = vmatpush1.msra.mxu0 0.0
    %680 = vmatprep.subr.mxu0 0.0
    %681 = vmatpush1.msra.mxu0 0.0
    %682 = vmatprep.subr.mxu0 0.0
    %683 = vmatpush1.msra.mxu0 0.0
    %684 = vmatprep.subr.mxu0 0.0
    %685 = vmatpush1.msra.mxu0 0.0
    %686 = vmatprep.subr.mxu0 0.0
    %687 = vmatpush1.msra.mxu0 0.0
    %688 = vmatprep.subr.mxu0 0.0
    %689 = vmatpush1.msra.mxu0 0.0
    %690 = vmatprep.subr.mxu0 0.0
    %691 = vmatpush1.msra.mxu0 0.0
    %692 = vmatprep.subr.mxu0 0.0
    %693 = vmatpush1.msra.mxu0 0.0
    %694 = vmatprep.subr.mxu0 0.0
    %695 = vmatpush1.msra.mxu0 0.0
    %696 = vmatprep.subr.mxu0 0.0
    %697 = vmatpush1.msra.mxu0 0.0
    %698 = vmatprep.subr.mxu0 0.0
    %699 = vmatpush1.msra.mxu0 0.0
    %700 = vmatprep.subr.mxu0 0.0
    %701 = vmatpush1.msra.mxu0 0.0
    %702 = vmatprep.subr.mxu0 0.0
    %703 = vmatpush1.msra.mxu0 0.0
    %704 = vmatprep.subr.mxu0 0.0
    %705 = vmatpush1.msra.mxu0 0.0
    %706 = vmatprep.subr.mxu0 0.0
    %707 = vmatpush1.msra.mxu0 0.0
    %708 = vmatprep.subr.mxu0 0.0
    %709 = vmatpush1.msra.mxu0 0.0
    %710 = vmatprep.subr.mxu0 0.0
    %711 = vmatpush1.msra.mxu0 0.0
    %712 = vmatprep.subr.mxu0 0.0
    %713 = vmatpush1.msra.mxu0 0.0
    %714 = vmatprep.subr.mxu0 0.0
    %715 = vmatpush1.msra.mxu0 0.0
    %716 = vmatprep.mubr.f32.mxu0 0.0
    %717 = vmatmul.mubr.f32.gmra.mrb[0].mxu0 %v650
    %v718 = vpop.f32.mrb[0].mxu0
    %v719 = vadd.f32 0.0, %v718
    %v720 = vpop.f32.mrb[0].mxu0
    %721 = vdwg.mxu0
    %v722 = vadd.f32 %v646, %v719
    %v723 = vmul.f32 %v237, %v722
    %v724 = vtanh.pop %v723
    %v725 = vmul.f32 %v237, %v724
    %v726 = vadd.f32 %v725, %v238
    %v727 = vmul.f32 %v726, %v643
    %729 = vrot.lane.b32.xlu0 %v726, 64
    %v730 = vpop.permute.xlu0 %729
    %v732 = vmul.f32 %v726, %v730
    %734 = vrot.lane.b32.xlu0 %v732, 32
    %v735 = vpop.permute.xlu0 %734
    %v737 = vadd.f32 %v727, %v735
    %v738 = vtanh.pop %v737
    %740 = vrot.lane.b32.xlu0 %v738, 64
    %v741 = vpop.permute.xlu0 %740
    %v743 = vmul.f32 %v726, %v741
    %vm744 = vcmp.gt.s32.totalorder %v233, 4
    %v745 = vsel %vm744, %v737, %v643
    %v746 = vsel %vm744, %v743, %v644
    %s747 = scalar_lea.vmem [#allocation2], 40
    %v748 = vld [vmem:[%s747] sm:$0xff]
    %750 = vrot.lane.b32.xlu0 %v746, 32
    %v751 = vpop.permute.xlu0 %750
    %v752 = vsel %vm240, %v751, 0
    %754 = vmatprep.subr.mxu0 0.0
    %755 = vmatpush1.msra.mxu0 %v226
    %756 = vmatprep.subr.mxu0 0.0
    %757 = vmatpush1.msra.mxu0 %v227
    %758 = vmatprep.subr.mxu0 0.0
    %759 = vmatpush1.msra.mxu0 %v228
    %760 = vmatprep.subr.mxu0 0.0
    %761 = vmatpush1.msra.mxu0 %v229
    %762 = vmatprep.subr.mxu0 0.0
    %763 = vmatpush1.msra.mxu0 0.0
    %764 = vmatprep.subr.mxu0 0.0
    %765 = vmatpush1.msra.mxu0 0.0
    %766 = vmatprep.subr.mxu0 0.0
    %767 = vmatpush1.msra.mxu0 0.0
    %768 = vmatprep.subr.mxu0 0.0
    %769 = vmatpush1.msra.mxu0 0.0
    %770 = vmatprep.subr.mxu0 0.0
    %771 = vmatpush1.msra.mxu0 0.0
    %772 = vmatprep.subr.mxu0 0.0
    %773 = vmatpush1.msra.mxu0 0.0
    %774 = vmatprep.subr.mxu0 0.0
    %775 = vmatpush1.msra.mxu0 0.0
    %776 = vmatprep.subr.mxu0 0.0
    %777 = vmatpush1.msra.mxu0 0.0
    %778 = vmatprep.subr.mxu0 0.0
    %779 = vmatpush1.msra.mxu0 0.0
    %780 = vmatprep.subr.mxu0 0.0
    %781 = vmatpush1.msra.mxu0 0.0
    %782 = vmatprep.subr.mxu0 0.0
    %783 = vmatpush1.msra.mxu0 0.0
    %784 = vmatprep.subr.mxu0 0.0
    %785 = vmatpush1.msra.mxu0 0.0
    %786 = vmatprep.subr.mxu0 0.0
    %787 = vmatpush1.msra.mxu0 0.0
    %788 = vmatprep.subr.mxu0 0.0
    %789 = vmatpush1.msra.mxu0 0.0
    %790 = vmatprep.subr.mxu0 0.0
    %791 = vmatpush1.msra.mxu0 0.0
    %792 = vmatprep.subr.mxu0 0.0
    %793 = vmatpush1.msra.mxu0 0.0
    %794 = vmatprep.subr.mxu0 0.0
    %795 = vmatpush1.msra.mxu0 0.0
    %796 = vmatprep.subr.mxu0 0.0
    %797 = vmatpush1.msra.mxu0 0.0
    %798 = vmatprep.subr.mxu0 0.0
    %799 = vmatpush1.msra.mxu0 0.0
    %800 = vmatprep.subr.mxu0 0.0
    %801 = vmatpush1.msra.mxu0 0.0
    %802 = vmatprep.subr.mxu0 0.0
    %803 = vmatpush1.msra.mxu0 0.0
    %804 = vmatprep.subr.mxu0 0.0
    %805 = vmatpush1.msra.mxu0 0.0
    %806 = vmatprep.subr.mxu0 0.0
    %807 = vmatpush1.msra.mxu0 0.0
    %808 = vmatprep.subr.mxu0 0.0
    %809 = vmatpush1.msra.mxu0 0.0
    %810 = vmatprep.subr.mxu0 0.0
    %811 = vmatpush1.msra.mxu0 0.0
    %812 = vmatprep.subr.mxu0 0.0
    %813 = vmatpush1.msra.mxu0 0.0
    %814 = vmatprep.subr.mxu0 0.0
    %815 = vmatpush1.msra.mxu0 0.0
    %816 = vmatprep.subr.mxu0 0.0
    %817 = vmatpush1.msra.mxu0 0.0
    %818 = vmatprep.mubr.f32.mxu0 0.0
    %819 = vmatmul.mubr.f32.gmra.mrb[0].mxu0 %v752
    %v820 = vpop.f32.mrb[0].mxu0
    %v821 = vadd.f32 0.0, %v820
    %v822 = vpop.f32.mrb[0].mxu0
    %823 = vdwg.mxu0
    %v824 = vadd.f32 %v748, %v821
    %v825 = vmul.f32 %v237, %v824
    %v826 = vtanh.pop %v825
    %v827 = vmul.f32 %v237, %v826
    %v828 = vadd.f32 %v827, %v238
    %v829 = vmul.f32 %v828, %v745
    %831 = vrot.lane.b32.xlu0 %v828, 64
    %v832 = vpop.permute.xlu0 %831
    %v834 = vmul.f32 %v828, %v832
    %836 = vrot.lane.b32.xlu0 %v834, 32
    %v837 = vpop.permute.xlu0 %836
    %v839 = vadd.f32 %v829, %v837
    %v840 = vtanh.pop %v839
    %842 = vrot.lane.b32.xlu0 %v840, 64
    %v843 = vpop.permute.xlu0 %842
    %v845 = vmul.f32 %v828, %v843
    %vm846 = vcmp.gt.s32.totalorder %v233, 5
    %v847 = vsel %vm846, %v839, %v745
    %v848 = vsel %vm846, %v845, %v746
    %s849 = scalar_lea.vmem [#allocation2], 48
    %v850 = vld [vmem:[%s849] sm:$0xff]
    %852 = vrot.lane.b32.xlu0 %v848, 32
    %v853 = vpop.permute.xlu0 %852
    %v854 = vsel %vm240, %v853, 0
    %856 = vmatprep.subr.mxu0 0.0
    %857 = vmatpush1.msra.mxu0 %v226
    %858 = vmatprep.subr.mxu0 0.0
    %859 = vmatpush1.msra.mxu0 %v227
    %860 = vmatprep.subr.mxu0 0.0
    %861 = vmatpush1.msra.mxu0 %v228
    %862 = vmatprep.subr.mxu0 0.0
    %863 = vmatpush1.msra.mxu0 %v229
    %864 = vmatprep.subr.mxu0 0.0
    %865 = vmatpush1.msra.mxu0 0.0
    %866 = vmatprep.subr.mxu0 0.0
    %867 = vmatpush1.msra.mxu0 0.0
    %868 = vmatprep.subr.mxu0 0.0
    %869 = vmatpush1.msra.mxu0 0.0
    %870 = vmatprep.subr.mxu0 0.0
    %871 = vmatpush1.msra.mxu0 0.0
    %872 = vmatprep.subr.mxu0 0.0
    %873 = vmatpush1.msra.mxu0 0.0
    %874 = vmatprep.subr.mxu0 0.0
    %875 = vmatpush1.msra.mxu0 0.0
    %876 = vmatprep.subr.mxu0 0.0
    %877 = vmatpush1.msra.mxu0 0.0
    %878 = vmatprep.subr.mxu0 0.0
    %879 = vmatpush1.msra.mxu0 0.0
    %880 = vmatprep.subr.mxu0 0.0
    %881 = vmatpush1.msra.mxu0 0.0
    %882 = vmatprep.subr.mxu0 0.0
    %883 = vmatpush1.msra.mxu0 0.0
    %884 = vmatprep.subr.mxu0 0.0
    %885 = vmatpush1.msra.mxu0 0.0
    %886 = vmatprep.subr.mxu0 0.0
    %887 = vmatpush1.msra.mxu0 0.0
    %888 = vmatprep.subr.mxu0 0.0
    %889 = vmatpush1.msra.mxu0 0.0
    %890 = vmatprep.subr.mxu0 0.0
    %891 = vmatpush1.msra.mxu0 0.0
    %892 = vmatprep.subr.mxu0 0.0
    %893 = vmatpush1.msra.mxu0 0.0
    %894 = vmatprep.subr.mxu0 0.0
    %895 = vmatpush1.msra.mxu0 0.0
    %896 = vmatprep.subr.mxu0 0.0
    %897 = vmatpush1.msra.mxu0 0.0
    %898 = vmatprep.subr.mxu0 0.0
    %899 = vmatpush1.msra.mxu0 0.0
    %900 = vmatprep.subr.mxu0 0.0
    %901 = vmatpush1.msra.mxu0 0.0
    %902 = vmatprep.subr.mxu0 0.0
    %903 = vmatpush1.msra.mxu0 0.0
    %904 = vmatprep.subr.mxu0 0.0
    %905 = vmatpush1.msra.mxu0 0.0
    %906 = vmatprep.subr.mxu0 0.0
    %907 = vmatpush1.msra.mxu0 0.0
    %908 = vmatprep.subr.mxu0 0.0
    %909 = vmatpush1.msra.mxu0 0.0
    %910 = vmatprep.subr.mxu0 0.0
    %911 = vmatpush1.msra.mxu0 0.0
    %912 = vmatprep.subr.mxu0 0.0
    %913 = vmatpush1.msra.mxu0 0.0
    %914 = vmatprep.subr.mxu0 0.0
    %915 = vmatpush1.msra.mxu0 0.0
    %916 = vmatprep.subr.mxu0 0.0
    %917 = vmatpush1.msra.mxu0 0.0
    %918 = vmatprep.subr.mxu0 0.0
    %919 = vmatpush1.msra.mxu0 0.0
    %920 = vmatprep.mubr.f32.mxu0 0.0
    %921 = vmatmul.mubr.f32.gmra.mrb[0].mxu0 %v854
    %v922 = vpop.f32.mrb[0].mxu0
    %v923 = vadd.f32 0.0, %v922
    %v924 = vpop.f32.mrb[0].mxu0
    %925 = vdwg.mxu0
    %v926 = vadd.f32 %v850, %v923
    %v927 = vmul.f32 %v237, %v926
    %v928 = vtanh.pop %v927
    %v929 = vmul.f32 %v237, %v928
    %v930 = vadd.f32 %v929, %v238
    %v931 = vmul.f32 %v930, %v847
    %933 = vrot.lane.b32.xlu0 %v930, 64
    %v934 = vpop.permute.xlu0 %933
    %v936 = vmul.f32 %v930, %v934
    %938 = vrot.lane.b32.xlu0 %v936, 32
    %v939 = vpop.permute.xlu0 %938
    %v941 = vadd.f32 %v931, %v939
    %v942 = vtanh.pop %v941
    %944 = vrot.lane.b32.xlu0 %v942, 64
    %v945 = vpop.permute.xlu0 %944
    %v947 = vmul.f32 %v930, %v945
    %vm948 = vcmp.gt.s32.totalorder %v233, 6
    %v949 = vsel %vm948, %v941, %v847
    %v950 = vsel %vm948, %v947, %v848
    %s951 = scalar_lea.vmem [#allocation2], 56
    %v952 = vld [vmem:[%s951] sm:$0xff]
    %954 = vrot.lane.b32.xlu0 %v950, 32
    %v955 = vpop.permute.xlu0 %954
    %v956 = vsel %vm240, %v955, 0
    %958 = vmatprep.subr.mxu0 0.0
    %959 = vmatpush1.msra.mxu0 %v226
    %960 = vmatprep.subr.mxu0 0.0
    %961 = vmatpush1.msra.mxu0 %v227
    %962 = vmatprep.subr.mxu0 0.0
    %963 = vmatpush1.msra.mxu0 %v228
    %964 = vmatprep.subr.mxu0 0.0
    %965 = vmatpush1.msra.mxu0 %v229
    %966 = vmatprep.subr.mxu0 0.0
    %967 = vmatpush1.msra.mxu0 0.0
    %968 = vmatprep.subr.mxu0 0.0
    %969 = vmatpush1.msra.mxu0 0.0
    %970 = vmatprep.subr.mxu0 0.0
    %971 = vmatpush1.msra.mxu0 0.0
    %972 = vmatprep.subr.mxu0 0.0
    %973 = vmatpush1.msra.mxu0 0.0
    %974 = vmatprep.subr.mxu0 0.0
    %975 = vmatpush1.msra.mxu0 0.0
    %976 = vmatprep.subr.mxu0 0.0
    %977 = vmatpush1.msra.mxu0 0.0
    %978 = vmatprep.subr.mxu0 0.0
    %979 = vmatpush1.msra.mxu0 0.0
    %980 = vmatprep.subr.mxu0 0.0
    %981 = vmatpush1.msra.mxu0 0.0
    %982 = vmatprep.subr.mxu0 0.0
    %983 = vmatpush1.msra.mxu0 0.0
    %984 = vmatprep.subr.mxu0 0.0
    %985 = vmatpush1.msra.mxu0 0.0
    %986 = vmatprep.subr.mxu0 0.0
    %987 = vmatpush1.msra.mxu0 0.0
    %988 = vmatprep.subr.mxu0 0.0
    %989 = vmatpush1.msra.mxu0 0.0
    %990 = vmatprep.subr.mxu0 0.0
    %991 = vmatpush1.msra.mxu0 0.0
    %992 = vmatprep.subr.mxu0 0.0
    %993 = vmatpush1.msra.mxu0 0.0
    %994 = vmatprep.subr.mxu0 0.0
    %995 = vmatpush1.msra.mxu0 0.0
    %996 = vmatprep.subr.mxu0 0.0
    %997 = vmatpush1.msra.mxu0 0.0
    %998 = vmatprep.subr.mxu0 0.0
    %999 = vmatpush1.msra.mxu0 0.0
    %1000 = vmatprep.subr.mxu0 0.0
    %1001 = vmatpush1.msra.mxu0 0.0
    %1002 = vmatprep.subr.mxu0 0.0
    %1003 = vmatpush1.msra.mxu0 0.0
    %1004 = vmatprep.subr.mxu0 0.0
    %1005 = vmatpush1.msra.mxu0 0.0
    %1006 = vmatprep.subr.mxu0 0.0
    %1007 = vmatpush1.msra.mxu0 0.0
    %1008 = vmatprep.subr.mxu0 0.0
    %1009 = vmatpush1.msra.mxu0 0.0
    %1010 = vmatprep.subr.mxu0 0.0
    %1011 = vmatpush1.msra.mxu0 0.0
    %1012 = vmatprep.subr.mxu0 0.0
    %1013 = vmatpush1.msra.mxu0 0.0
    %1014 = vmatprep.subr.mxu0 0.0
    %1015 = vmatpush1.msra.mxu0 0.0
    %1016 = vmatprep.subr.mxu0 0.0
    %1017 = vmatpush1.msra.mxu0 0.0
    %1018 = vmatprep.subr.mxu0 0.0
    %1019 = vmatpush1.msra.mxu0 0.0
    %1020 = vmatprep.subr.mxu0 0.0
    %1021 = vmatpush1.msra.mxu0 0.0
    %1022 = vmatprep.mubr.f32.mxu0 0.0
    %1023 = vmatmul.mubr.f32.gmra.mrb[0].mxu0 %v956
    %v1024 = vpop.f32.mrb[0].mxu0
    %v1025 = vadd.f32 0.0, %v1024
    %v1026 = vpop.f32.mrb[0].mxu0
    %1027 = vdwg.mxu0
    %v1028 = vadd.f32 %v952, %v1025
    %v1029 = vmul.f32 %v237, %v1028
    %v1030 = vtanh.pop %v1029
    %v1031 = vmul.f32 %v237, %v1030
    %v1032 = vadd.f32 %v1031, %v238
    %v1033 = vmul.f32 %v1032, %v949
    %1035 = vrot.lane.b32.xlu0 %v1032, 64
    %v1036 = vpop.permute.xlu0 %1035
    %v1038 = vmul.f32 %v1032, %v1036
    %1040 = vrot.lane.b32.xlu0 %v1038, 32
    %v1041 = vpop.permute.xlu0 %1040
    %v1043 = vadd.f32 %v1033, %v1041
    %v1044 = vtanh.pop %v1043
    %1046 = vrot.lane.b32.xlu0 %v1044, 64
    %v1047 = vpop.permute.xlu0 %1046
    %v1049 = vmul.f32 %v1032, %v1047
    %vm1050 = vcmp.gt.s32.totalorder %v233, 7
    %v1051 = vsel %vm1050, %v1049, %v950
    %v1052 = vld [vmem:[%s4] sm:$0x1]
    %v1054 = vlaneseq
    %v1055 = vshrl.u32 %v1054, 7
    %v1056 = vsub.s32 0, %v1055
    %v1057 = vrot.slane %v1052, %v1056
    %1058 = vrot.lane.b32.xlu0 %v1057, 96
    %v1059 = vpop.permute.xlu0 %1058
    %v1061 = vmul.f32 %v1051, %v1059
    %1063 = vrot.lane.b32.xlu0 %v1061, 32
    %v1064 = vpop.permute.xlu0 %1063
    %v1066 = vsel %vm240, %v1064, 0.0
    %1067 = vadd.xlane.f32.xlu0 %v1066
    %v1068 = vpop.xlane.xlu0 %1067
    %v1069 = vld [vmem:[#allocation3] sm:$0x1]
    %v1071 = vlaneseq
    %v1072 = vshrl.u32 %v1071, 7
    %v1073 = vsub.s32 0, %v1072
    %v1074 = vrot.slane %v1069, %v1073
    %v1076 = vadd.f32 %v1068, %v1074
    %vm1077 = vcmask 7168
    %1078 = vst.msk [vmem:[%s6] sm:$0xff] %vm1077, %v1076
    // Predicated region
    $region30: #{rnn_forward.1} parent=1 // pred_check
      _
    $region31: #{rnn_forward.1} parent=1 // pred_check_branch
      %1080 = sbr.rel (0) target = $region33
    $region32: #{rnn_forward.1} parent=1 // pred_region
      _
    $region33: #{rnn_forward.1} parent=1 // pred_fallthru
      _
    // Predicated region
    $region34: #{rnn_forward.1} parent=1 // pred_check
      _
    $region35: #{rnn_forward.1} parent=1 // pred_check_branch
      %1082 = sbr.rel (0) target = $region37
    $region36: #{rnn_forward.1} parent=1 // pred_region
      _
    $region37: #{rnn_forward.1} parent=1 // pred_fallthru
      _
    %1083 = vsyncpa [#allocation5], 1

</llo_original>
